<compile_context>
chip_gen: v5e
topology: v5e:2x2
jax: 0.10.0
libtpu: 0.0.40
codegen_flags: <defaults>
</compile_context>

<pallas_src>
import functools
import math

import jax
import jax.numpy as jnp
from jax.experimental import pallas as pl
from jax.experimental.pallas import tpu as pltpu


# ----------------------------- Pallas kernel -------------------------------- #
def encoder_layer_kernel(*refs, nhead, separate_residual):
    # Input refs (order set by the wrapper):
    #   xq      (1, TQ, E)  query tile
    #   [xres   (1, TQ, E)  residual tile of src, only if separate_residual]
    #   x       (1, L, E)   full key/value slab (read only at qt == 0)
    #   16 weight/bias refs, then out_ref, then K/V VMEM scratch.
    if separate_residual:
        xq_ref, xres_ref, x_ref = refs[0], refs[1], refs[2]
        rest = refs[3:]
    else:
        xq_ref, x_ref = refs[0], refs[1]
        xres_ref = xq_ref                      # src_q is src: reuse the query tile
        rest = refs[2:]
    (wq_ref, wk_ref, wv_ref, bq_ref, bk_ref, bv_ref,
     wo_ref, bo_ref, w1_ref, b1_ref, w2_ref, b2_ref,
     g1_ref, be1_ref, g2_ref, be2_ref,
     out_ref, k_ref, v_ref) = rest

    TQ = xq_ref.shape[1]
    E = xq_ref.shape[2]
    H = nhead
    Dh = E // H
    scale = 1.0 / math.sqrt(Dh)

    def matT(a_bf, w_bf):
        # a @ w.T with bf16 operands and f32 accumulation on the MXU.
        return jax.lax.dot_general(
            a_bf, w_bf, (((1,), (1,)), ((), ())),
            preferred_element_type=jnp.float32)

    # ---- K/V projections: once per batch element, cached in VMEM scratch ----
    # Bias add fused, cast to bf16 immediately (no f32 copy kept live).
    @pl.when(pl.program_id(1) == 0)
    def _():
        xkv_bf = x_ref[0].astype(jnp.bfloat16)                        # (L, E)
        k_ref[...] = (matT(xkv_bf, wk_ref[...]) + bk_ref[...]).astype(jnp.bfloat16)
        v_ref[...] = (matT(xkv_bf, wv_ref[...]) + bv_ref[...]).astype(jnp.bfloat16)

    # ---- Q projection: bias + 1/sqrt(Dh) + bf16 cast fused ----
    xq_bf = xq_ref[0].astype(jnp.bfloat16)                            # (TQ, E)
    q_bf = ((matT(xq_bf, wq_ref[...]) + bq_ref[...]) * scale).astype(jnp.bfloat16)

    # ---- per-head attention; output projection folded into the head loop ----
    # Accumulator is a full-lane-width (TQ, E) f32 value -> no Dh-wide masked
    # scratch stores and no concat-heads VMEM round trip.
    # TODO(synk): flash-style key blocking (online softmax) for very large L.
    # TODO(synk): pack 2 heads per score matmul when Dh <= 64 (v6e/v7x 256-wide MXU).
    attn = jnp.zeros((TQ, E), jnp.float32)
    for hidx in range(H):
        lo, hi = hidx * Dh, (hidx + 1) * Dh
        qh = q_bf[:, lo:hi]                                           # (TQ, Dh)
        kh = k_ref[:, lo:hi]                                          # (L, Dh)
        vh = v_ref[:, lo:hi]                                          # (L, Dh)

        s = matT(qh, kh)                                              # (TQ, L) f32
        s = s - jnp.max(s, axis=-1, keepdims=True)                    # stable softmax
        p = jnp.exp(s)
        denom = jnp.sum(p, axis=-1, keepdims=True)
        ctx = jnp.dot(p.astype(jnp.bfloat16), vh,
                      preferred_element_type=jnp.float32)             # (TQ, Dh)
        ctx_bf = (ctx * pl.reciprocal(denom, approx=True)).astype(jnp.bfloat16)
        attn = attn + matT(ctx_bf, wo_ref[:, lo:hi])                  # (TQ, E) f32
    attn = attn + bo_ref[...]

    def layernorm(h, g, b):
        # Single-pass LN via E[x], E[x^2]; f32 throughout.
        mu = jnp.mean(h, axis=-1, keepdims=True)
        ms = jnp.mean(h * h, axis=-1, keepdims=True)
        return (h - mu) * jax.lax.rsqrt(ms - mu * mu + 1e-5) * g + b

    # ---- residual + norm1 (dropout1 = identity) ----
    x_res = xres_ref[0].astype(jnp.float32)                           # (TQ, E)
    h1 = layernorm(x_res + attn, g1_ref[...], be1_ref[...])

    # ---- feed-forward: linear1 -> ReLU -> linear2 (bf16 matmuls, f32 acc) ----
    f = jnp.maximum(matT(h1.astype(jnp.bfloat16), w1_ref[...]) + b1_ref[...], 0.0)
    f2 = matT(f.astype(jnp.bfloat16), w2_ref[...]) + b2_ref[...]

    # ---- residual + norm2 (dropout2 = identity) ----
    out = layernorm(h1 + f2, g2_ref[...], be2_ref[...])
    out_ref[0] = out.astype(out_ref.dtype)


# ------------------------------- wrapper ------------------------------------ #
def _pick_vmem_limit_bytes():
    # Explicit scoped-VMEM limit: defaults (16 MiB v5e / 32 MiB v6e,v7x) are too
    # small once L/E/Dff are non-toy. Leave headroom below physical capacity.
    try:
        kind = jax.devices()[0].device_kind.lower()
    except Exception:
        kind = ""
    if "v7" in kind:
        return 56 * 1024 * 1024        # 64 MiB physical per TC on v7x
    if "v5" in kind or "v6" in kind:
        return 100 * 1024 * 1024       # 128 MiB physical
    return 64 * 1024 * 1024


def transformer_encoder_layer(src, params, nhead, src_q=None, q_tile=None):
    """src, src_q: (batch, seq, d_model) float32."""
    separate_residual = (src_q is not None) and (src_q is not src)
    if src_q is None:
        src_q = src
    assert src_q.shape == src.shape, "src_q must match src shape (self-attention layer)"
    N, L, E = src.shape
    H = nhead
    assert E % H == 0
    Dff = params["w1"].shape[0]

    # Query tiling: multiples of 256 feed the v6e/v7x 256-wide MXU; 128 suffices
    # on v5e. Default (whole sequence) is right for small L / the demo shapes.
    TQ = L if q_tile is None else q_tile
    assert L % TQ == 0 and (TQ == L or TQ % 8 == 0), "q_tile must divide L (mult of 8)"
    nQ = L // TQ

    bf16, f32 = jnp.bfloat16, jnp.float32
    Wi, bi = params["in_proj_w"], params["in_proj_b"]
    wq = Wi[:E].astype(bf16)                          # (E, E) lane-dense
    wk = Wi[E:2 * E].astype(bf16)
    wv = Wi[2 * E:].astype(bf16)
    bq = bi[:E].reshape(1, E).astype(f32)
    bk = bi[E:2 * E].reshape(1, E).astype(f32)
    bv = bi[2 * E:].reshape(1, E).astype(f32)
    wo = params["out_proj_w"].astype(bf16)            # (E, E)
    bo = params["out_proj_b"].reshape(1, E).astype(f32)
    w1 = params["w1"].astype(bf16)                    # (Dff, E)
    b1 = params["b1"].reshape(1, Dff).astype(f32)
    w2 = params["w2"].astype(bf16)                    # (E, Dff)
    b2 = params["b2"].reshape(1, E).astype(f32)
    g1 = params["g1"].reshape(1, E).astype(f32)
    be1 = params["be1"].reshape(1, E).astype(f32)
    g2 = params["g2"].reshape(1, E).astype(f32)
    be2 = params["be2"].reshape(1, E).astype(f32)

    weights = [wq, wk, wv, bq, bk, bv, wo, bo, w1, b1, w2, b2, g1, be1, g2, be2]

    xq_spec = pl.BlockSpec((1, TQ, E), lambda b, qt: (b, qt, 0))
    # Full KV slab: constant across query tiles and only read at qt == 0
    # (projections are cached), so single-buffer it.
    xkv_spec = pl.BlockSpec((1, L, E), lambda b, qt: (b, 0, 0),
                            pipeline_mode=pl.Buffered(1))

    def weight_spec(a):
        nd = a.ndim
        return pl.BlockSpec(a.shape, lambda b, qt, _n=nd: (0,) * _n,
                            pipeline_mode=pl.Buffered(1))   # constant-index: 1 buffer

    if separate_residual:
        # Residual rows come from `src` (PyTorch: src = src + dropout1(src2)).
        inputs = [src_q, src, src] + weights
        in_specs = [xq_spec, xq_spec, xkv_spec] + [weight_spec(a) for a in weights]
    else:
        inputs = [src_q, src] + weights
        in_specs = [xq_spec, xkv_spec] + [weight_spec(a) for a in weights]

    # Advisory cost estimate (K/V projections counted once per batch element).
    flops = N * (6 * L * E * E            # q + (cached) k,v projections
                 + 4 * L * L * E          # scores + context over all heads
                 + 2 * L * E * E          # output projection
                 + 4 * L * E * Dff)       # FFN
    transcendentals = N * (H * L * L + H * L + 2 * L)
    weight_bytes = sum(int(a.size) * a.dtype.itemsize for a in weights)
    io_bytes = (int(src.size) * src.dtype.itemsize
                + (int(src_q.size) * src_q.dtype.itemsize if separate_residual else 0)
                + N * L * E * src.dtype.itemsize)            # output
    cost = pl.CostEstimate(flops=int(flops),
                           transcendentals=int(transcendentals),
                           bytes_accessed=int(weight_bytes + io_bytes))

    kernel = functools.partial(encoder_layer_kernel, nhead=H,
                               separate_residual=separate_residual)

    return pl.pallas_call(
        kernel,
        out_shape=jax.ShapeDtypeStruct((N, L, E), src.dtype),
        grid=(N, nQ),
        in_specs=in_specs,
        out_specs=pl.BlockSpec((1, TQ, E), lambda b, qt: (b, qt, 0)),
        scratch_shapes=[pltpu.VMEM((L, E), jnp.bfloat16),    # cached K (bias folded)
                        pltpu.VMEM((L, E), jnp.bfloat16)],   # cached V (bias folded)
        compiler_params=pltpu.CompilerParams(
            # qt axis carries the K/V cache -> "arbitrary"; batch shards across cores.
            dimension_semantics=("parallel", "arbitrary"),
            vmem_limit_bytes=_pick_vmem_limit_bytes()),
        cost_estimate=cost,
    )(*inputs)


# --------------------------- pure-JAX reference ------------------------------ #
def ref_forward(src_q, src, p, H):
    N, L, E = src.shape
    Dh = E // H
    Wi, bi = p["in_proj_w"], p["in_proj_b"]
    Wq, Wk, Wv = Wi[:E], Wi[E:2 * E], Wi[2 * E:]
    bq, bk, bv = bi[:E], bi[E:2 * E], bi[2 * E:]

    q = src_q @ Wq.T + bq
    k = src @ Wk.T + bk
    v = src @ Wv.T + bv

    def split(t):
        return t.reshape(N, L, H, Dh).transpose(0, 2, 1, 3)

    qh, kh, vh = split(q), split(k), split(v)
    s = (qh @ kh.transpose(0, 1, 3, 2)) / math.sqrt(Dh)
    a = jax.nn.softmax(s, axis=-1)
    ctx = (a @ vh).transpose(0, 2, 1, 3).reshape(N, L, E)
    attn = ctx @ p["out_proj_w"].T + p["out_proj_b"]

    def ln(h, g, b):
        mu = h.mean(-1, keepdims=True)
        var = ((h - mu) ** 2).mean(-1, keepdims=True)
        return (h - mu) / jnp.sqrt(var + 1e-5) * g + b

    h1 = ln(src + attn, p["g1"], p["be1"])
    f = jax.nn.relu(h1 @ p["w1"].T + p["b1"]) @ p["w2"].T + p["b2"]
    return ln(h1 + f, p["g2"], p["be2"])


# --------------------------------- main -------------------------------------- #
if __name__ == "__main__":
    # Demo shapes (small; at these sizes every matmul is below one MXU pass —
    # pad E/Dff to 128-lane multiples outside the kernel if such sizes are real).
    N, L, E, H, Dff = 2, 8, 32, 4, 64   # batch, seq, d_model, nhead, dim_feedforward

    key = jax.random.PRNGKey(0)
    ks = jax.random.split(key, 10)
    params = {
        "in_proj_w": 0.1 * jax.random.normal(ks[0], (3 * E, E), jnp.float32),
        "in_proj_b": 0.1 * jax.random.normal(ks[1], (3 * E,), jnp.float32),
        "out_proj_w": 0.1 * jax.random.normal(ks[2], (E, E), jnp.float32),
        "out_proj_b": 0.1 * jax.random.normal(ks[3], (E,), jnp.float32),
        "w1": 0.1 * jax.random.normal(ks[4], (Dff, E), jnp.float32),
        "b1": 0.1 * jax.random.normal(ks[5], (Dff,), jnp.float32),
        "w2": 0.1 * jax.random.normal(ks[6], (E, Dff), jnp.float32),
        "b2": 0.1 * jax.random.normal(ks[7], (E,), jnp.float32),
        "g1": jnp.ones((E,), jnp.float32),
        "be1": jnp.zeros((E,), jnp.float32),
        "g2": jnp.ones((E,), jnp.float32),
        "be2": jnp.zeros((E,), jnp.float32),
    }

    src = jax.random.normal(ks[8], (N, L, E), jnp.float32)

    out = transformer_encoder_layer(src, params, nhead=H)
    out = jax.block_until_ready(out)

    ref = jax.block_until_ready(ref_forward(src, src, params, H))
    assert out.shape == (N, L, E)
    # Tolerance accounts for bf16 MXU operands (f32 accumulation) vs pure-f32 reference.
    assert jnp.allclose(out, ref, rtol=3e-2, atol=3e-2), (
        f"max abs err {jnp.max(jnp.abs(out - ref))}"
    )
    print("KERNEL_OK")
</pallas_src>

<mosaic_0001>
module attributes {stable_mosaic.version = 11 : i64} {
  func.func @encoder_layer_kernel(%arg0: i32, %arg1: i32, %arg2: memref<1x8x32xf32, #tpu.memory_space<vmem>>, %arg3: memref<1x8x32xf32, #tpu.memory_space<vmem>>, %arg4: memref<32x32xbf16, #tpu.memory_space<vmem>>, %arg5: memref<32x32xbf16, #tpu.memory_space<vmem>>, %arg6: memref<32x32xbf16, #tpu.memory_space<vmem>>, %arg7: memref<1x32xf32, #tpu.memory_space<vmem>>, %arg8: memref<1x32xf32, #tpu.memory_space<vmem>>, %arg9: memref<1x32xf32, #tpu.memory_space<vmem>>, %arg10: memref<32x32xbf16, #tpu.memory_space<vmem>>, %arg11: memref<1x32xf32, #tpu.memory_space<vmem>>, %arg12: memref<64x32xbf16, #tpu.memory_space<vmem>>, %arg13: memref<1x64xf32, #tpu.memory_space<vmem>>, %arg14: memref<32x64xbf16, #tpu.memory_space<vmem>>, %arg15: memref<1x32xf32, #tpu.memory_space<vmem>>, %arg16: memref<1x32xf32, #tpu.memory_space<vmem>>, %arg17: memref<1x32xf32, #tpu.memory_space<vmem>>, %arg18: memref<1x32xf32, #tpu.memory_space<vmem>>, %arg19: memref<1x32xf32, #tpu.memory_space<vmem>>, %arg20: memref<1x8x32xf32, #tpu.memory_space<vmem>>, %arg21: memref<8x32xbf16, #tpu.memory_space<vmem>>, %arg22: memref<8x32xbf16, #tpu.memory_space<vmem>>) attributes {dimension_semantics = [#tpu.dimension_semantics<parallel>, #tpu.dimension_semantics<arbitrary>], iteration_bounds = array<i64: 2, 1>, scalar_prefetch = 0 : i64, scratch_operands = 2 : i64, tpu.core_type = #tpu.core_type<tc>, window_params = [{transform_indices = @transform_0, window_bounds = array<i64: 1, 8, 32>}, {pipeline_mode = #tpu.pipeline_mode<synchronous>, transform_indices = @transform_1, window_bounds = array<i64: 1, 8, 32>}, {pipeline_mode = #tpu.pipeline_mode<synchronous>, transform_indices = @transform_2, window_bounds = array<i64: 32, 32>}, {pipeline_mode = #tpu.pipeline_mode<synchronous>, transform_indices = @transform_3, window_bounds = array<i64: 32, 32>}, {pipeline_mode = #tpu.pipeline_mode<synchronous>, transform_indices = @transform_4, window_bounds = array<i64: 32, 32>}, {pipeline_mode = #tpu.pipeline_mode<synchronous>, transform_indices = @transform_5, window_bounds = array<i64: 1, 32>}, {pipeline_mode = #tpu.pipeline_mode<synchronous>, transform_indices = @transform_6, window_bounds = array<i64: 1, 32>}, {pipeline_mode = #tpu.pipeline_mode<synchronous>, transform_indices = @transform_7, window_bounds = array<i64: 1, 32>}, {pipeline_mode = #tpu.pipeline_mode<synchronous>, transform_indices = @transform_8, window_bounds = array<i64: 32, 32>}, {pipeline_mode = #tpu.pipeline_mode<synchronous>, transform_indices = @transform_9, window_bounds = array<i64: 1, 32>}, {pipeline_mode = #tpu.pipeline_mode<synchronous>, transform_indices = @transform_10, window_bounds = array<i64: 64, 32>}, {pipeline_mode = #tpu.pipeline_mode<synchronous>, transform_indices = @transform_11, window_bounds = array<i64: 1, 64>}, {pipeline_mode = #tpu.pipeline_mode<synchronous>, transform_indices = @transform_12, window_bounds = array<i64: 32, 64>}, {pipeline_mode = #tpu.pipeline_mode<synchronous>, transform_indices = @transform_13, window_bounds = array<i64: 1, 32>}, {pipeline_mode = #tpu.pipeline_mode<synchronous>, transform_indices = @transform_14, window_bounds = array<i64: 1, 32>}, {pipeline_mode = #tpu.pipeline_mode<synchronous>, transform_indices = @transform_15, window_bounds = array<i64: 1, 32>}, {pipeline_mode = #tpu.pipeline_mode<synchronous>, transform_indices = @transform_16, window_bounds = array<i64: 1, 32>}, {pipeline_mode = #tpu.pipeline_mode<synchronous>, transform_indices = @transform_17, window_bounds = array<i64: 1, 32>}, {transform_indices = @transform_18, window_bounds = array<i64: 1, 8, 32>}]} {
    %c0_i32 = arith.constant 0 : i32
    %0 = arith.cmpi eq, %arg1, %c0_i32 : i32
    %1 = arith.extui %0 : i1 to i32
    %c0_i32_0 = arith.constant 0 : i32
    %2 = arith.cmpi ne, %1, %c0_i32_0 : i32
    scf.if %2 {
      %c0_87 = arith.constant 0 : index
      %c0_88 = arith.constant 0 : index
      %c0_89 = arith.constant 0 : index
      %167 = vector.load %arg3[%c0_87, %c0_88, %c0_89] : memref<1x8x32xf32, #tpu.memory_space<vmem>>, vector<1x8x32xf32>
      %168 = vector.shape_cast %167 : vector<1x8x32xf32> to vector<8x32xf32>
      %169 = arith.truncf %168 : vector<8x32xf32> to vector<8x32xbf16>
      %c0_90 = arith.constant 0 : index
      %c0_91 = arith.constant 0 : index
      %170 = vector.load %arg5[%c0_90, %c0_91] : memref<32x32xbf16, #tpu.memory_space<vmem>>, vector<32x32xbf16>
      %cst_92 = arith.constant dense<0.000000e+00> : vector<8x32xf32>
      %171 = tpu.matmul %169, %170, %cst_92 {dimension_numbers = #tpu.dot_dimension_numbers<[1], [1], [0], [0], [0, 0, 1, 0], [], []>} : vector<8x32xbf16>, vector<32x32xbf16>, vector<8x32xf32> -> vector<8x32xf32>
      %c0_93 = arith.constant 0 : index
      %c0_94 = arith.constant 0 : index
      %172 = vector.load %arg8[%c0_93, %c0_94] : memref<1x32xf32, #tpu.memory_space<vmem>>, vector<1x32xf32>
      %173 = vector.broadcast %172 : vector<1x32xf32> to vector<8x32xf32>
      %174 = arith.addf %171, %173 : vector<8x32xf32>
      %175 = arith.truncf %174 : vector<8x32xf32> to vector<8x32xbf16>
      %c0_95 = arith.constant 0 : index
      %c0_96 = arith.constant 0 : index
      %176 = vector.load %arg21[%c0_95, %c0_96] : memref<8x32xbf16, #tpu.memory_space<vmem>>, vector<8x32xbf16>
      tpu.vector_store %arg21[%c0_95, %c0_96], %175 {strides = array<i32>} : memref<8x32xbf16, #tpu.memory_space<vmem>>, vector<8x32xbf16>,
      %c0_97 = arith.constant 0 : index
      %c0_98 = arith.constant 0 : index
      %177 = vector.load %arg6[%c0_97, %c0_98] : memref<32x32xbf16, #tpu.memory_space<vmem>>, vector<32x32xbf16>
      %cst_99 = arith.constant dense<0.000000e+00> : vector<8x32xf32>
      %178 = tpu.matmul %169, %177, %cst_99 {dimension_numbers = #tpu.dot_dimension_numbers<[1], [1], [0], [0], [0, 0, 1, 0], [], []>} : vector<8x32xbf16>, vector<32x32xbf16>, vector<8x32xf32> -> vector<8x32xf32>
      %c0_100 = arith.constant 0 : index
      %c0_101 = arith.constant 0 : index
      %179 = vector.load %arg9[%c0_100, %c0_101] : memref<1x32xf32, #tpu.memory_space<vmem>>, vector<1x32xf32>
      %180 = vector.broadcast %179 : vector<1x32xf32> to vector<8x32xf32>
      %181 = arith.addf %178, %180 : vector<8x32xf32>
      %182 = arith.truncf %181 : vector<8x32xf32> to vector<8x32xbf16>
      %c0_102 = arith.constant 0 : index
      %c0_103 = arith.constant 0 : index
      %183 = vector.load %arg22[%c0_102, %c0_103] : memref<8x32xbf16, #tpu.memory_space<vmem>>, vector<8x32xbf16>
      tpu.vector_store %arg22[%c0_102, %c0_103], %182 {strides = array<i32>} : memref<8x32xbf16, #tpu.memory_space<vmem>>, vector<8x32xbf16>,
    } else {
    }
    %c0 = arith.constant 0 : index
    %c0_1 = arith.constant 0 : index
    %c0_2 = arith.constant 0 : index
    %3 = vector.load %arg2[%c0, %c0_1, %c0_2] : memref<1x8x32xf32, #tpu.memory_space<vmem>>, vector<1x8x32xf32>
    %4 = vector.shape_cast %3 : vector<1x8x32xf32> to vector<8x32xf32>
    %5 = arith.truncf %4 : vector<8x32xf32> to vector<8x32xbf16>
    %c0_3 = arith.constant 0 : index
    %c0_4 = arith.constant 0 : index
    %6 = vector.load %arg4[%c0_3, %c0_4] : memref<32x32xbf16, #tpu.memory_space<vmem>>, vector<32x32xbf16>
    %cst = arith.constant dense<0.000000e+00> : vector<8x32xf32>
    %7 = tpu.matmul %5, %6, %cst {dimension_numbers = #tpu.dot_dimension_numbers<[1], [1], [0], [0], [0, 0, 1, 0], [], []>} : vector<8x32xbf16>, vector<32x32xbf16>, vector<8x32xf32> -> vector<8x32xf32>
    %c0_5 = arith.constant 0 : index
    %c0_6 = arith.constant 0 : index
    %8 = vector.load %arg7[%c0_5, %c0_6] : memref<1x32xf32, #tpu.memory_space<vmem>>, vector<1x32xf32>
    %9 = vector.broadcast %8 : vector<1x32xf32> to vector<8x32xf32>
    %10 = arith.addf %7, %9 : vector<8x32xf32>
    %cst_7 = arith.constant 0.353553385 : f32
    %11 = vector.broadcast %cst_7 : f32 to vector<8x32xf32>
    %12 = arith.mulf %10, %11 : vector<8x32xf32>
    %13 = arith.truncf %12 : vector<8x32xf32> to vector<8x32xbf16>
    %cst_8 = arith.constant 0.000000e+00 : f32
    %14 = vector.broadcast %cst_8 : f32 to vector<8x32xf32>
    %15 = vector.extract_strided_slice %13 {offsets = [0, 0], sizes = [8, 8], strides = [1, 1]} : vector<8x32xbf16> to vector<8x8xbf16>
    %c0_9 = arith.constant 0 : index
    %c0_10 = arith.constant 0 : index
    %16 = vector.load %arg21[%c0_9, %c0_10] : memref<8x32xbf16, #tpu.memory_space<vmem>>, vector<8x8xbf16>
    %c0_11 = arith.constant 0 : index
    %c0_12 = arith.constant 0 : index
    %17 = vector.load %arg22[%c0_11, %c0_12] : memref<8x32xbf16, #tpu.memory_space<vmem>>, vector<8x8xbf16>
    %cst_13 = arith.constant dense<0.000000e+00> : vector<8x8xf32>
    %18 = tpu.matmul %15, %16, %cst_13 {dimension_numbers = #tpu.dot_dimension_numbers<[1], [1], [0], [0], [0, 0, 1, 0], [], []>} : vector<8x8xbf16>, vector<8x8xbf16>, vector<8x8xf32> -> vector<8x8xf32>
    %cst_14 = arith.constant dense<0xFF800000> : vector<8xf32>
    %19 = vector.multi_reduction <maximumf>, %18, %cst_14 [1] : vector<8x8xf32> to vector<8xf32>
    %20 = vector.shape_cast %19 : vector<8xf32> to vector<8x1xf32>
    %21 = vector.broadcast %20 : vector<8x1xf32> to vector<8x8xf32>
    %22 = arith.subf %18, %21 : vector<8x8xf32>
    %23 = math.exp %22 : vector<8x8xf32>
    %cst_15 = arith.constant dense<0.000000e+00> : vector<8xf32>
    %24 = vector.multi_reduction <add>, %23, %cst_15 [1] : vector<8x8xf32> to vector<8xf32>
    %25 = vector.shape_cast %24 : vector<8xf32> to vector<8x1xf32>
    %26 = arith.truncf %23 : vector<8x8xf32> to vector<8x8xbf16>
    %cst_16 = arith.constant dense<0.000000e+00> : vector<8x8xf32>
    %27 = tpu.matmul %26, %17, %cst_16 {dimension_numbers = #tpu.dot_dimension_numbers<[1], [0], [0], [1], [0, 0, 1, 1], [], []>} : vector<8x8xbf16>, vector<8x8xbf16>, vector<8x8xf32> -> vector<8x8xf32>
    %28 = tpu.reciprocal %25 {approx = true} : vector<8x1xf32> -> vector<8x1xf32>
    %29 = vector.broadcast %28 : vector<8x1xf32> to vector<8x8xf32>
    %30 = arith.mulf %27, %29 : vector<8x8xf32>
    %31 = arith.truncf %30 : vector<8x8xf32> to vector<8x8xbf16>
    %c0_17 = arith.constant 0 : index
    %c0_18 = arith.constant 0 : index
    %32 = vector.load %arg10[%c0_17, %c0_18] : memref<32x32xbf16, #tpu.memory_space<vmem>>, vector<32x8xbf16>
    %cst_19 = arith.constant dense<0.000000e+00> : vector<8x32xf32>
    %33 = tpu.matmul %31, %32, %cst_19 {dimension_numbers = #tpu.dot_dimension_numbers<[1], [1], [0], [0], [0, 0, 1, 0], [], []>} : vector<8x8xbf16>, vector<32x8xbf16>, vector<8x32xf32> -> vector<8x32xf32>
    %34 = arith.addf %14, %33 : vector<8x32xf32>
    %35 = vector.extract_strided_slice %13 {offsets = [0, 8], sizes = [8, 8], strides = [1, 1]} : vector<8x32xbf16> to vector<8x8xbf16>
    %c0_20 = arith.constant 0 : index
    %c8 = arith.constant 8 : index
    %36 = vector.load %arg21[%c0_20, %c8] : memref<8x32xbf16, #tpu.memory_space<vmem>>, vector<8x8xbf16>
    %c0_21 = arith.constant 0 : index
    %c8_22 = arith.constant 8 : index
    %37 = vector.load %arg22[%c0_21, %c8_22] : memref<8x32xbf16, #tpu.memory_space<vmem>>, vector<8x8xbf16>
    %cst_23 = arith.constant dense<0.000000e+00> : vector<8x8xf32>
    %38 = tpu.matmul %35, %36, %cst_23 {dimension_numbers = #tpu.dot_dimension_numbers<[1], [1], [0], [0], [0, 0, 1, 0], [], []>} : vector<8x8xbf16>, vector<8x8xbf16>, vector<8x8xf32> -> vector<8x8xf32>
    %cst_24 = arith.constant dense<0xFF800000> : vector<8xf32>
    %39 = vector.multi_reduction <maximumf>, %38, %cst_24 [1] : vector<8x8xf32> to vector<8xf32>
    %40 = vector.shape_cast %39 : vector<8xf32> to vector<8x1xf32>
    %41 = vector.broadcast %40 : vector<8x1xf32> to vector<8x8xf32>
    %42 = arith.subf %38, %41 : vector<8x8xf32>
    %43 = math.exp %42 : vector<8x8xf32>
    %cst_25 = arith.constant dense<0.000000e+00> : vector<8xf32>
    %44 = vector.multi_reduction <add>, %43, %cst_25 [1] : vector<8x8xf32> to vector<8xf32>
    %45 = vector.shape_cast %44 : vector<8xf32> to vector<8x1xf32>
    %46 = arith.truncf %43 : vector<8x8xf32> to vector<8x8xbf16>
    %cst_26 = arith.constant dense<0.000000e+00> : vector<8x8xf32>
    %47 = tpu.matmul %46, %37, %cst_26 {dimension_numbers = #tpu.dot_dimension_numbers<[1], [0], [0], [1], [0, 0, 1, 1], [], []>} : vector<8x8xbf16>, vector<8x8xbf16>, vector<8x8xf32> -> vector<8x8xf32>
    %48 = tpu.reciprocal %45 {approx = true} : vector<8x1xf32> -> vector<8x1xf32>
    %49 = vector.broadcast %48 : vector<8x1xf32> to vector<8x8xf32>
    %50 = arith.mulf %47, %49 : vector<8x8xf32>
    %51 = arith.truncf %50 : vector<8x8xf32> to vector<8x8xbf16>
    %c0_27 = arith.constant 0 : index
    %c8_28 = arith.constant 8 : index
    %52 = vector.load %arg10[%c0_27, %c8_28] : memref<32x32xbf16, #tpu.memory_space<vmem>>, vector<32x8xbf16>
    %cst_29 = arith.constant dense<0.000000e+00> : vector<8x32xf32>
    %53 = tpu.matmul %51, %52, %cst_29 {dimension_numbers = #tpu.dot_dimension_numbers<[1], [1], [0], [0], [0, 0, 1, 0], [], []>} : vector<8x8xbf16>, vector<32x8xbf16>, vector<8x32xf32> -> vector<8x32xf32>
    %54 = arith.addf %34, %53 : vector<8x32xf32>
    %55 = vector.extract_strided_slice %13 {offsets = [0, 16], sizes = [8, 8], strides = [1, 1]} : vector<8x32xbf16> to vector<8x8xbf16>
    %c0_30 = arith.constant 0 : index
    %c16 = arith.constant 16 : index
    %56 = vector.load %arg21[%c0_30, %c16] : memref<8x32xbf16, #tpu.memory_space<vmem>>, vector<8x8xbf16>
    %c0_31 = arith.constant 0 : index
    %c16_32 = arith.constant 16 : index
    %57 = vector.load %arg22[%c0_31, %c16_32] : memref<8x32xbf16, #tpu.memory_space<vmem>>, vector<8x8xbf16>
    %cst_33 = arith.constant dense<0.000000e+00> : vector<8x8xf32>
    %58 = tpu.matmul %55, %56, %cst_33 {dimension_numbers = #tpu.dot_dimension_numbers<[1], [1], [0], [0], [0, 0, 1, 0], [], []>} : vector<8x8xbf16>, vector<8x8xbf16>, vector<8x8xf32> -> vector<8x8xf32>
    %cst_34 = arith.constant dense<0xFF800000> : vector<8xf32>
    %59 = vector.multi_reduction <maximumf>, %58, %cst_34 [1] : vector<8x8xf32> to vector<8xf32>
    %60 = vector.shape_cast %59 : vector<8xf32> to vector<8x1xf32>
    %61 = vector.broadcast %60 : vector<8x1xf32> to vector<8x8xf32>
    %62 = arith.subf %58, %61 : vector<8x8xf32>
    %63 = math.exp %62 : vector<8x8xf32>
    %cst_35 = arith.constant dense<0.000000e+00> : vector<8xf32>
    %64 = vector.multi_reduction <add>, %63, %cst_35 [1] : vector<8x8xf32> to vector<8xf32>
    %65 = vector.shape_cast %64 : vector<8xf32> to vector<8x1xf32>
    %66 = arith.truncf %63 : vector<8x8xf32> to vector<8x8xbf16>
    %cst_36 = arith.constant dense<0.000000e+00> : vector<8x8xf32>
    %67 = tpu.matmul %66, %57, %cst_36 {dimension_numbers = #tpu.dot_dimension_numbers<[1], [0], [0], [1], [0, 0, 1, 1], [], []>} : vector<8x8xbf16>, vector<8x8xbf16>, vector<8x8xf32> -> vector<8x8xf32>
    %68 = tpu.reciprocal %65 {approx = true} : vector<8x1xf32> -> vector<8x1xf32>
    %69 = vector.broadcast %68 : vector<8x1xf32> to vector<8x8xf32>
    %70 = arith.mulf %67, %69 : vector<8x8xf32>
    %71 = arith.truncf %70 : vector<8x8xf32> to vector<8x8xbf16>
    %c0_37 = arith.constant 0 : index
    %c16_38 = arith.constant 16 : index
    %72 = vector.load %arg10[%c0_37, %c16_38] : memref<32x32xbf16, #tpu.memory_space<vmem>>, vector<32x8xbf16>
    %cst_39 = arith.constant dense<0.000000e+00> : vector<8x32xf32>
    %73 = tpu.matmul %71, %72, %cst_39 {dimension_numbers = #tpu.dot_dimension_numbers<[1], [1], [0], [0], [0, 0, 1, 0], [], []>} : vector<8x8xbf16>, vector<32x8xbf16>, vector<8x32xf32> -> vector<8x32xf32>
    %74 = arith.addf %54, %73 : vector<8x32xf32>
    %75 = vector.extract_strided_slice %13 {offsets = [0, 24], sizes = [8, 8], strides = [1, 1]} : vector<8x32xbf16> to vector<8x8xbf16>
    %c0_40 = arith.constant 0 : index
    %c24 = arith.constant 24 : index
    %76 = vector.load %arg21[%c0_40, %c24] : memref<8x32xbf16, #tpu.memory_space<vmem>>, vector<8x8xbf16>
    %c0_41 = arith.constant 0 : index
    %c24_42 = arith.constant 24 : index
    %77 = vector.load %arg22[%c0_41, %c24_42] : memref<8x32xbf16, #tpu.memory_space<vmem>>, vector<8x8xbf16>
    %cst_43 = arith.constant dense<0.000000e+00> : vector<8x8xf32>
    %78 = tpu.matmul %75, %76, %cst_43 {dimension_numbers = #tpu.dot_dimension_numbers<[1], [1], [0], [0], [0, 0, 1, 0], [], []>} : vector<8x8xbf16>, vector<8x8xbf16>, vector<8x8xf32> -> vector<8x8xf32>
    %cst_44 = arith.constant dense<0xFF800000> : vector<8xf32>
    %79 = vector.multi_reduction <maximumf>, %78, %cst_44 [1] : vector<8x8xf32> to vector<8xf32>
    %80 = vector.shape_cast %79 : vector<8xf32> to vector<8x1xf32>
    %81 = vector.broadcast %80 : vector<8x1xf32> to vector<8x8xf32>
    %82 = arith.subf %78, %81 : vector<8x8xf32>
    %83 = math.exp %82 : vector<8x8xf32>
    %cst_45 = arith.constant dense<0.000000e+00> : vector<8xf32>
    %84 = vector.multi_reduction <add>, %83, %cst_45 [1] : vector<8x8xf32> to vector<8xf32>
    %85 = vector.shape_cast %84 : vector<8xf32> to vector<8x1xf32>
    %86 = arith.truncf %83 : vector<8x8xf32> to vector<8x8xbf16>
    %cst_46 = arith.constant dense<0.000000e+00> : vector<8x8xf32>
    %87 = tpu.matmul %86, %77, %cst_46 {dimension_numbers = #tpu.dot_dimension_numbers<[1], [0], [0], [1], [0, 0, 1, 1], [], []>} : vector<8x8xbf16>, vector<8x8xbf16>, vector<8x8xf32> -> vector<8x8xf32>
    %88 = tpu.reciprocal %85 {approx = true} : vector<8x1xf32> -> vector<8x1xf32>
    %89 = vector.broadcast %88 : vector<8x1xf32> to vector<8x8xf32>
    %90 = arith.mulf %87, %89 : vector<8x8xf32>
    %91 = arith.truncf %90 : vector<8x8xf32> to vector<8x8xbf16>
    %c0_47 = arith.constant 0 : index
    %c24_48 = arith.constant 24 : index
    %92 = vector.load %arg10[%c0_47, %c24_48] : memref<32x32xbf16, #tpu.memory_space<vmem>>, vector<32x8xbf16>
    %cst_49 = arith.constant dense<0.000000e+00> : vector<8x32xf32>
    %93 = tpu.matmul %91, %92, %cst_49 {dimension_numbers = #tpu.dot_dimension_numbers<[1], [1], [0], [0], [0, 0, 1, 0], [], []>} : vector<8x8xbf16>, vector<32x8xbf16>, vector<8x32xf32> -> vector<8x32xf32>
    %94 = arith.addf %74, %93 : vector<8x32xf32>
    %c0_50 = arith.constant 0 : index
    %c0_51 = arith.constant 0 : index
    %95 = vector.load %arg11[%c0_50, %c0_51] : memref<1x32xf32, #tpu.memory_space<vmem>>, vector<1x32xf32>
    %96 = vector.broadcast %95 : vector<1x32xf32> to vector<8x32xf32>
    %97 = arith.addf %94, %96 : vector<8x32xf32>
    %c0_52 = arith.constant 0 : index
    %c0_53 = arith.constant 0 : index
    %c0_54 = arith.constant 0 : index
    %98 = vector.load %arg2[%c0_52, %c0_53, %c0_54] : memref<1x8x32xf32, #tpu.memory_space<vmem>>, vector<1x8x32xf32>
    %99 = vector.shape_cast %98 : vector<1x8x32xf32> to vector<8x32xf32>
    %100 = arith.addf %99, %97 : vector<8x32xf32>
    %c0_55 = arith.constant 0 : index
    %c0_56 = arith.constant 0 : index
    %101 = vector.load %arg16[%c0_55, %c0_56] : memref<1x32xf32, #tpu.memory_space<vmem>>, vector<1x32xf32>
    %c0_57 = arith.constant 0 : index
    %c0_58 = arith.constant 0 : index
    %102 = vector.load %arg17[%c0_57, %c0_58] : memref<1x32xf32, #tpu.memory_space<vmem>>, vector<1x32xf32>
    %cst_59 = arith.constant dense<0.000000e+00> : vector<8xf32>
    %103 = vector.multi_reduction <add>, %100, %cst_59 [1] : vector<8x32xf32> to vector<8xf32>
    %104 = vector.shape_cast %103 : vector<8xf32> to vector<8x1xf32>
    %cst_60 = arith.constant 3.200000e+01 : f32
    %105 = vector.broadcast %cst_60 : f32 to vector<8x1xf32>
    %106 = arith.divf %104, %105 : vector<8x1xf32>
    %107 = arith.mulf %100, %100 : vector<8x32xf32>
    %cst_61 = arith.constant dense<0.000000e+00> : vector<8xf32>
    %108 = vector.multi_reduction <add>, %107, %cst_61 [1] : vector<8x32xf32> to vector<8xf32>
    %109 = vector.shape_cast %108 : vector<8xf32> to vector<8x1xf32>
    %cst_62 = arith.constant 3.200000e+01 : f32
    %110 = vector.broadcast %cst_62 : f32 to vector<8x1xf32>
    %111 = arith.divf %109, %110 : vector<8x1xf32>
    %112 = vector.broadcast %106 : vector<8x1xf32> to vector<8x32xf32>
    %113 = arith.subf %100, %112 : vector<8x32xf32>
    %114 = arith.mulf %106, %106 : vector<8x1xf32>
    %115 = arith.subf %111, %114 : vector<8x1xf32>
    %cst_63 = arith.constant 9.99999974E-6 : f32
    %116 = vector.broadcast %cst_63 : f32 to vector<8x1xf32>
    %117 = arith.addf %115, %116 : vector<8x1xf32>
    %118 = math.rsqrt %117 : vector<8x1xf32>
    %119 = vector.broadcast %118 : vector<8x1xf32> to vector<8x32xf32>
    %120 = arith.mulf %113, %119 : vector<8x32xf32>
    %121 = vector.broadcast %101 : vector<1x32xf32> to vector<8x32xf32>
    %122 = arith.mulf %120, %121 : vector<8x32xf32>
    %123 = vector.broadcast %102 : vector<1x32xf32> to vector<8x32xf32>
    %124 = arith.addf %122, %123 : vector<8x32xf32>
    %125 = arith.truncf %124 : vector<8x32xf32> to vector<8x32xbf16>
    %c0_64 = arith.constant 0 : index
    %c0_65 = arith.constant 0 : index
    %126 = vector.load %arg12[%c0_64, %c0_65] : memref<64x32xbf16, #tpu.memory_space<vmem>>, vector<64x32xbf16>
    %cst_66 = arith.constant dense<0.000000e+00> : vector<8x64xf32>
    %127 = tpu.matmul %125, %126, %cst_66 {dimension_numbers = #tpu.dot_dimension_numbers<[1], [1], [0], [0], [0, 0, 1, 0], [], []>} : vector<8x32xbf16>, vector<64x32xbf16>, vector<8x64xf32> -> vector<8x64xf32>
    %c0_67 = arith.constant 0 : index
    %c0_68 = arith.constant 0 : index
    %128 = vector.load %arg13[%c0_67, %c0_68] : memref<1x64xf32, #tpu.memory_space<vmem>>, vector<1x64xf32>
    %129 = vector.broadcast %128 : vector<1x64xf32> to vector<8x64xf32>
    %130 = arith.addf %127, %129 : vector<8x64xf32>
    %cst_69 = arith.constant 0.000000e+00 : f32
    %131 = vector.broadcast %cst_69 : f32 to vector<8x64xf32>
    %132 = arith.maximumf %130, %131 : vector<8x64xf32>
    %133 = arith.truncf %132 : vector<8x64xf32> to vector<8x64xbf16>
    %c0_70 = arith.constant 0 : index
    %c0_71 = arith.constant 0 : index
    %134 = vector.load %arg14[%c0_70, %c0_71] : memref<32x64xbf16, #tpu.memory_space<vmem>>, vector<32x64xbf16>
    %cst_72 = arith.constant dense<0.000000e+00> : vector<8x32xf32>
    %135 = tpu.matmul %133, %134, %cst_72 {dimension_numbers = #tpu.dot_dimension_numbers<[1], [1], [0], [0], [0, 0, 1, 0], [], []>} : vector<8x64xbf16>, vector<32x64xbf16>, vector<8x32xf32> -> vector<8x32xf32>
    %c0_73 = arith.constant 0 : index
    %c0_74 = arith.constant 0 : index
    %136 = vector.load %arg15[%c0_73, %c0_74] : memref<1x32xf32, #tpu.memory_space<vmem>>, vector<1x32xf32>
    %137 = vector.broadcast %136 : vector<1x32xf32> to vector<8x32xf32>
    %138 = arith.addf %135, %137 : vector<8x32xf32>
    %139 = arith.addf %124, %138 : vector<8x32xf32>
    %c0_75 = arith.constant 0 : index
    %c0_76 = arith.constant 0 : index
    %140 = vector.load %arg18[%c0_75, %c0_76] : memref<1x32xf32, #tpu.memory_space<vmem>>, vector<1x32xf32>
    %c0_77 = arith.constant 0 : index
    %c0_78 = arith.constant 0 : index
    %141 = vector.load %arg19[%c0_77, %c0_78] : memref<1x32xf32, #tpu.memory_space<vmem>>, vector<1x32xf32>
    %cst_79 = arith.constant dense<0.000000e+00> : vector<8xf32>
    %142 = vector.multi_reduction <add>, %139, %cst_79 [1] : vector<8x32xf32> to vector<8xf32>
    %143 = vector.shape_cast %142 : vector<8xf32> to vector<8x1xf32>
    %cst_80 = arith.constant 3.200000e+01 : f32
    %144 = vector.broadcast %cst_80 : f32 to vector<8x1xf32>
    %145 = arith.divf %143, %144 : vector<8x1xf32>
    %146 = arith.mulf %139, %139 : vector<8x32xf32>
    %cst_81 = arith.constant dense<0.000000e+00> : vector<8xf32>
    %147 = vector.multi_reduction <add>, %146, %cst_81 [1] : vector<8x32xf32> to vector<8xf32>
    %148 = vector.shape_cast %147 : vector<8xf32> to vector<8x1xf32>
    %cst_82 = arith.constant 3.200000e+01 : f32
    %149 = vector.broadcast %cst_82 : f32 to vector<8x1xf32>
    %150 = arith.divf %148, %149 : vector<8x1xf32>
    %151 = vector.broadcast %145 : vector<8x1xf32> to vector<8x32xf32>
    %152 = arith.subf %139, %151 : vector<8x32xf32>
    %153 = arith.mulf %145, %145 : vector<8x1xf32>
    %154 = arith.subf %150, %153 : vector<8x1xf32>
    %cst_83 = arith.constant 9.99999974E-6 : f32
    %155 = vector.broadcast %cst_83 : f32 to vector<8x1xf32>
    %156 = arith.addf %154, %155 : vector<8x1xf32>
    %157 = math.rsqrt %156 : vector<8x1xf32>
    %158 = vector.broadcast %157 : vector<8x1xf32> to vector<8x32xf32>
    %159 = arith.mulf %152, %158 : vector<8x32xf32>
    %160 = vector.broadcast %140 : vector<1x32xf32> to vector<8x32xf32>
    %161 = arith.mulf %159, %160 : vector<8x32xf32>
    %162 = vector.broadcast %141 : vector<1x32xf32> to vector<8x32xf32>
    %163 = arith.addf %161, %162 : vector<8x32xf32>
    %c0_84 = arith.constant 0 : index
    %c0_85 = arith.constant 0 : index
    %c0_86 = arith.constant 0 : index
    %164 = vector.load %arg20[%c0_84, %c0_85, %c0_86] : memref<1x8x32xf32, #tpu.memory_space<vmem>>, vector<1x8x32xf32>
    %165 = vector.shape_cast %164 : vector<1x8x32xf32> to vector<8x32xf32>
    %166 = vector.shape_cast %163 : vector<8x32xf32> to vector<1x8x32xf32>
    tpu.vector_store %arg20[%c0_84, %c0_85, %c0_86], %166 {strides = array<i32>} : memref<1x8x32xf32, #tpu.memory_space<vmem>>, vector<1x8x32xf32>,
    return
  }
  func.func @transform_0(%arg0: i32, %arg1: i32) -> (i32, i32, i32) {
    %c0_i32 = arith.constant 0 : i32
    %c0_i32_0 = arith.constant 0 : i32
    return %arg0, %arg1, %c0_i32 : i32, i32, i32
  }
  func.func @transform_1(%arg0: i32, %arg1: i32) -> (i32, i32, i32) {
    %c0_i32 = arith.constant 0 : i32
    %c0_i32_0 = arith.constant 0 : i32
    %c0_i32_1 = arith.constant 0 : i32
    return %arg0, %c0_i32, %c0_i32_0 : i32, i32, i32
  }
  func.func @transform_2(%arg0: i32, %arg1: i32) -> (i32, i32) {
    %c0_i32 = arith.constant 0 : i32
    %c0_i32_0 = arith.constant 0 : i32
    %c0_i32_1 = arith.constant 0 : i32
    return %c0_i32, %c0_i32_0 : i32, i32
  }
  func.func @transform_3(%arg0: i32, %arg1: i32) -> (i32, i32) {
    %c0_i32 = arith.constant 0 : i32
    %c0_i32_0 = arith.constant 0 : i32
    %c0_i32_1 = arith.constant 0 : i32
    return %c0_i32, %c0_i32_0 : i32, i32
  }
  func.func @transform_4(%arg0: i32, %arg1: i32) -> (i32, i32) {
    %c0_i32 = arith.constant 0 : i32
    %c0_i32_0 = arith.constant 0 : i32
    %c0_i32_1 = arith.constant 0 : i32
    return %c0_i32, %c0_i32_0 : i32, i32
  }
  func.func @transform_5(%arg0: i32, %arg1: i32) -> (i32, i32) {
    %c0_i32 = arith.constant 0 : i32
    %c0_i32_0 = arith.constant 0 : i32
    %c0_i32_1 = arith.constant 0 : i32
    return %c0_i32, %c0_i32_0 : i32, i32
  }
  func.func @transform_6(%arg0: i32, %arg1: i32) -> (i32, i32) {
    %c0_i32 = arith.constant 0 : i32
    %c0_i32_0 = arith.constant 0 : i32
    %c0_i32_1 = arith.constant 0 : i32
    return %c0_i32, %c0_i32_0 : i32, i32
  }
  func.func @transform_7(%arg0: i32, %arg1: i32) -> (i32, i32) {
    %c0_i32 = arith.constant 0 : i32
    %c0_i32_0 = arith.constant 0 : i32
    %c0_i32_1 = arith.constant 0 : i32
    return %c0_i32, %c0_i32_0 : i32, i32
  }
  func.func @transform_8(%arg0: i32, %arg1: i32) -> (i32, i32) {
    %c0_i32 = arith.constant 0 : i32
    %c0_i32_0 = arith.constant 0 : i32
    %c0_i32_1 = arith.constant 0 : i32
    return %c0_i32, %c0_i32_0 : i32, i32
  }
  func.func @transform_9(%arg0: i32, %arg1: i32) -> (i32, i32) {
    %c0_i32 = arith.constant 0 : i32
    %c0_i32_0 = arith.constant 0 : i32
    %c0_i32_1 = arith.constant 0 : i32
    return %c0_i32, %c0_i32_0 : i32, i32
  }
  func.func @transform_10(%arg0: i32, %arg1: i32) -> (i32, i32) {
    %c0_i32 = arith.constant 0 : i32
    %c0_i32_0 = arith.constant 0 : i32
    %c0_i32_1 = arith.constant 0 : i32
    return %c0_i32, %c0_i32_0 : i32, i32
  }
  func.func @transform_11(%arg0: i32, %arg1: i32) -> (i32, i32) {
    %c0_i32 = arith.constant 0 : i32
    %c0_i32_0 = arith.constant 0 : i32
    %c0_i32_1 = arith.constant 0 : i32
    return %c0_i32, %c0_i32_0 : i32, i32
  }
  func.func @transform_12(%arg0: i32, %arg1: i32) -> (i32, i32) {
    %c0_i32 = arith.constant 0 : i32
    %c0_i32_0 = arith.constant 0 : i32
    %c0_i32_1 = arith.constant 0 : i32
    return %c0_i32, %c0_i32_0 : i32, i32
  }
  func.func @transform_13(%arg0: i32, %arg1: i32) -> (i32, i32) {
    %c0_i32 = arith.constant 0 : i32
    %c0_i32_0 = arith.constant 0 : i32
    %c0_i32_1 = arith.constant 0 : i32
    return %c0_i32, %c0_i32_0 : i32, i32
  }
  func.func @transform_14(%arg0: i32, %arg1: i32) -> (i32, i32) {
    %c0_i32 = arith.constant 0 : i32
    %c0_i32_0 = arith.constant 0 : i32
    %c0_i32_1 = arith.constant 0 : i32
    return %c0_i32, %c0_i32_0 : i32, i32
  }
  func.func @transform_15(%arg0: i32, %arg1: i32) -> (i32, i32) {
    %c0_i32 = arith.constant 0 : i32
    %c0_i32_0 = arith.constant 0 : i32
    %c0_i32_1 = arith.constant 0 : i32
    return %c0_i32, %c0_i32_0 : i32, i32
  }
  func.func @transform_16(%arg0: i32, %arg1: i32) -> (i32, i32) {
    %c0_i32 = arith.constant 0 : i32
    %c0_i32_0 = arith.constant 0 : i32
    %c0_i32_1 = arith.constant 0 : i32
    return %c0_i32, %c0_i32_0 : i32, i32
  }
  func.func @transform_17(%arg0: i32, %arg1: i32) -> (i32, i32) {
    %c0_i32 = arith.constant 0 : i32
    %c0_i32_0 = arith.constant 0 : i32
    %c0_i32_1 = arith.constant 0 : i32
    return %c0_i32, %c0_i32_0 : i32, i32
  }
  func.func @transform_18(%arg0: i32, %arg1: i32) -> (i32, i32, i32) {
    %c0_i32 = arith.constant 0 : i32
    %c0_i32_0 = arith.constant 0 : i32
    return %arg0, %arg1, %c0_i32 : i32, i32, i32
  }
}

</mosaic_0001>

<llo_original>
// kernel: tpu_custom_call.1
$region0: #{tpu_custom_call.1}
  #allocation0 [shape = 'u32[]', space=smem, size = 0x4, offset = 0x4, fixed_abs, tag = 'smem constant byte address 0x4 - core index']
  #allocation1 [shape = 'u32[72,128]{1,0:T(1,128)}', space=vmem, size = 0x9000, scoped, tag = 'internal scratch']
  #allocation2 [shape = 'bf16[8,32]{1,0:T(8,128)(2,1)}', space=vmem, size = 0x800, scoped, tag = 'scratch operand']
  #allocation3 [shape = 'bf16[8,32]{1,0:T(8,128)(2,1)}', space=vmem, size = 0x800, scoped, tag = 'scratch operand']
  %s0 = inlined_call_operand.vmem [shape: f32[2,8,32], index: 0, kind: input, shape index: {}]
  %s1 = inlined_call_operand.vmem [shape: f32[2,8,32], index: 1, kind: input, shape index: {}]
  %s2 = inlined_call_operand.vmem [shape: bf16[32,32], index: 2, kind: input, shape index: {}]
  %s3 = inlined_call_operand.hbm [shape: bf16[32,32], index: 3, kind: input, shape index: {}]
  %s4 = inlined_call_operand.hbm [shape: bf16[32,32], index: 4, kind: input, shape index: {}]
  %s5 = inlined_call_operand.vmem [shape: f32[1,32], index: 5, kind: input, shape index: {}]
  %s6 = inlined_call_operand.vmem [shape: f32[1,32], index: 6, kind: input, shape index: {}]
  %s7 = inlined_call_operand.vmem [shape: f32[1,32], index: 7, kind: input, shape index: {}]
  %s8 = inlined_call_operand.hbm [shape: bf16[32,32], index: 8, kind: input, shape index: {}]
  %s9 = inlined_call_operand.vmem [shape: f32[1,32], index: 9, kind: input, shape index: {}]
  %s10 = inlined_call_operand.vmem [shape: bf16[64,32], index: 10, kind: input, shape index: {}]
  %s11 = inlined_call_operand.vmem [shape: f32[1,64], index: 11, kind: input, shape index: {}]
  %s12 = inlined_call_operand.hbm [shape: bf16[32,64], index: 12, kind: input, shape index: {}]
  %s13 = inlined_call_operand.vmem [shape: f32[1,32], index: 13, kind: input, shape index: {}]
  %s14 = inlined_call_operand.vmem [shape: f32[1,32], index: 14, kind: input, shape index: {}]
  %s15 = inlined_call_operand.vmem [shape: f32[1,32], index: 15, kind: input, shape index: {}]
  %s16 = inlined_call_operand.vmem [shape: f32[1,32], index: 16, kind: input, shape index: {}]
  %s17 = inlined_call_operand.vmem [shape: f32[1,32], index: 17, kind: input, shape index: {}]
  %s18 = inlined_call_operand.hbm [shape: f32[2,8,32], index: 18, kind: output, shape index: {}]
  %s19 = sld [smem:[#allocation0]]
  $region125: #{tpu_custom_call.1} parent=0
    _
  %s21 = ssub.s32 1, %s19
  %s22 = scalar_select 0, %s21, %s19
  $region1: #{tpu_custom_call.1} parent=0
    #allocation4 [shape = 'u8[8192]{0}', space=vmem, size = 0x2000, scoped, tag = 'input window, operand 3, single buffered']
    #allocation5 [shape = 's32[2]{0}', space=sflag, size = 0x8, scoped, tag = 'scoped memory for tpu_custom_call.1']
    #allocation6 [shape = 's32[2]{0}', space=sflag, size = 0x8, scoped, tag = 'scoped memory for tpu_custom_call.1']
    #allocation7 [shape = 'u8[8192]{0}', space=vmem, size = 0x2000, scoped, tag = 'input window, operand 4, single buffered']
    #allocation8 [shape = 's32[1]{0}', space=sflag, size = 0x4, scoped, tag = 'scoped memory for tpu_custom_call.1']
    #allocation9 [shape = 'u8[8192]{0}', space=vmem, size = 0x2000, scoped, tag = 'input window, operand 8, single buffered']
    #allocation10 [shape = 'u8[8192]{0}', space=vmem, size = 0x2000, scoped, tag = 'input window, operand 12, single buffered']
    #allocation11 [shape = 's32[1]{0}', space=sflag, size = 0x4, scoped, tag = 'scoped memory for tpu_custom_call.1']
    #allocation12 [shape = 'u8[8192]{0}', space=vmem, size = 0x2000, scoped, tag = 'output window, operand 0']
    %23 = vsyncpa [#allocation5], 0
    %24 = vsyncpa [#allocation8], 0
    %25 = vsyncpa [#allocation11], 0
    %26 = vsyncpa [#allocation6], 0
    %s27 = scalar_lea.sflag [#allocation6], 1
    %28 = vsyncpa %s27, 0
    loop: start=0, step=1, limit=4
    $region2: #{tpu_custom_call.1} parent=1 // loop_pre_header
      _
    $region3: #{tpu_custom_call.1} parent=1 // loop_header
      %s30 = sphi 0, %s34
      %p31 = scmp.ge.s32.totalorder %s30, 4
      %s37 = sphi 0, %s49
      %s38 = sphi 0, %s45
      %s39 = sphi 0, %s37
      %s40 = sphi 0, %s38
      %s41 = sphi 0, %s39
      %s42 = sphi 0, %s40
      %s54 = sphi 0, %s56
      %s57 = sphi 0, %s54
      %s58 = sphi 0, %s57
      %s74 = sphi 0, %s58
      %s80 = sphi 0, %s82
      %s83 = sphi 0, %s80
      %s84 = sphi 0, %s83
      %s100 = sphi 0, %s84
      %s104 = sphi 0, %s104
      %s106 = sphi 0, %s104
      %s107 = sphi 0, %s106
      %s121 = sphi 0, %s107
      %s125 = sphi 0, %s125
      %s127 = sphi 0, %s125
      %s128 = sphi 0, %s127
      %s142 = sphi 0, %s128
      %s146 = sphi 0, %s146
      %s148 = sphi 0, %s146
      %s149 = sphi 0, %s148
      %s163 = sphi 0, %s149
      %s167 = sphi 0, %s167
      %s169 = sphi 0, %s167
      %s170 = sphi 0, %s169
      %s184 = sphi 0, %s170
      %s188 = sphi 0, %s188
      %s190 = sphi 0, %s188
      %s191 = sphi 0, %s190
      %s205 = sphi 0, %s191
      %s209 = sphi 0, %s209
      %s211 = sphi 0, %s209
      %s212 = sphi 0, %s211
      %s226 = sphi 0, %s212
      %s230 = sphi 0, %s230
      %s232 = sphi 0, %s230
      %s233 = sphi 0, %s232
      %s247 = sphi 0, %s233
      %s251 = sphi 0, %s251
      %s253 = sphi 0, %s251
      %s254 = sphi 0, %s253
      %s268 = sphi 0, %s254
      %s272 = sphi 0, %s272
      %s274 = sphi 0, %s272
      %s275 = sphi 0, %s274
      %s289 = sphi 0, %s275
      %s293 = sphi 0, %s293
      %s295 = sphi 0, %s293
      %s296 = sphi 0, %s295
      %s310 = sphi 0, %s296
      %s314 = sphi 0, %s314
      %s316 = sphi 0, %s314
      %s317 = sphi 0, %s316
      %s331 = sphi 0, %s317
      %s335 = sphi 0, %s335
      %s337 = sphi 0, %s335
      %s338 = sphi 0, %s337
      %s352 = sphi 0, %s338
      %s356 = sphi 0, %s356
      %s358 = sphi 0, %s356
      %s359 = sphi 0, %s358
      %s373 = sphi 0, %s359
      %s377 = sphi 0, %s377
      %s379 = sphi 0, %s377
      %s380 = sphi 0, %s379
      %s394 = sphi 0, %s380
      %s398 = sphi 0, %s398
      %s400 = sphi 0, %s398
      %s401 = sphi 0, %s400
      %s415 = sphi 0, %s401
      %s419 = sphi 0, %s419
      %s421 = sphi 0, %s419
      %s422 = sphi 0, %s421
      %s436 = sphi 0, %s422
      %s444 = sphi 0, %s446
      %s447 = sphi 0, %s444
      %s448 = sphi 0, %s447
      %s464 = sphi 0, %s448
    $region4: #{tpu_custom_call.1} parent=1 // loop_header_branch
      %33 = sbr.rel (%p31) target = $region8
    $region5: #{tpu_custom_call.1} parent=1 // loop_body
      %s35 = ssub.s32 %s30, 1
      %s36 = ssub.s32 %s30, 2
      %s43 = sadd.s32 1, %s38
      %p44 = scmp.ge.s32.totalorder %s43, 1
      %s45 = scalar_select %p44, 0, %s43
      %s46 = sadd.s32 1, %s37
      %s47 = scalar_select %p44, %s46, %s37
      %p48 = scmp.ge.s32.totalorder %s47, 2
      %s49 = scalar_select %p48, 0, %s47
      %s50 = ssub.s32 %s37, %s49
      %s51 = ssub.s32 %s38, %s45
      %s52 = sor.u32 %s50, %s51
      %p53 = scmp.eq.s32.totalorder %s52, 0
      %s55 = sadd.s32 %s54, 1
      %s56 = scalar_select %p53, %s54, %s55
      %p59 = pneg %p53
      %p60 = scmp.eq.s32.totalorder %s30, 1
      %p61 = por %p59, %p60
      %p62 = scmp.ne.s32.totalorder %s54, %s57
      %p63 = scmp.eq.s32.totalorder %s30, 0
      %p64 = por %p62, %p63
      %p65 = scmp.ne.s32.totalorder %s54, %s57
      %p66 = scmp.eq.s32.totalorder %s35, 1
      %p67 = por %p65, %p66
      %p68 = scmp.ne.s32.totalorder %s57, %s58
      %p69 = scmp.eq.s32.totalorder %s35, 0
      %p70 = por %p68, %p69
      %p71 = scmp.ne.s32.totalorder %s57, %s58
      %p72 = scmp.eq.s32.totalorder %s36, 1
      %p73 = por %p71, %p72
      %p75 = scmp.ne.s32.totalorder %s58, %s74
      %p76 = scmp.eq.s32.totalorder %s36, 0
      %p77 = por %p75, %p76
      %s78 = ssub.s32 %s37, %s49
      %p79 = scmp.eq.s32.totalorder %s78, 0
      %s81 = sadd.s32 %s80, 1
      %s82 = scalar_select %p79, %s80, %s81
      %p85 = pneg %p79
      %p86 = scmp.eq.s32.totalorder %s30, 1
      %p87 = por %p85, %p86
      %p88 = scmp.ne.s32.totalorder %s80, %s83
      %p89 = scmp.eq.s32.totalorder %s30, 0
      %p90 = por %p88, %p89
      %p91 = scmp.ne.s32.totalorder %s80, %s83
      %p92 = scmp.eq.s32.totalorder %s35, 1
      %p93 = por %p91, %p92
      %p94 = scmp.ne.s32.totalorder %s83, %s84
      %p95 = scmp.eq.s32.totalorder %s35, 0
      %p96 = por %p94, %p95
      %p97 = scmp.ne.s32.totalorder %s83, %s84
      %p98 = scmp.eq.s32.totalorder %s36, 1
      %p99 = por %p97, %p98
      %p101 = scmp.ne.s32.totalorder %s84, %s100
      %p102 = scmp.eq.s32.totalorder %s36, 0
      %p103 = por %p101, %p102
      %s105 = sadd.s32 %s104, 1
      %p108 = scmp.eq.s32.totalorder %s30, 1
      %p109 = scmp.ne.s32.totalorder %s104, %s106
      %p110 = scmp.eq.s32.totalorder %s30, 0
      %p111 = por %p109, %p110
      %p112 = scmp.ne.s32.totalorder %s104, %s106
      %p113 = scmp.eq.s32.totalorder %s35, 1
      %p114 = por %p112, %p113
      %p115 = scmp.ne.s32.totalorder %s106, %s107
      %p116 = scmp.eq.s32.totalorder %s35, 0
      %p117 = por %p115, %p116
      %p118 = scmp.ne.s32.totalorder %s106, %s107
      %p119 = scmp.eq.s32.totalorder %s36, 1
      %p120 = por %p118, %p119
      %p122 = scmp.ne.s32.totalorder %s107, %s121
      %p123 = scmp.eq.s32.totalorder %s36, 0
      %p124 = por %p122, %p123
      %s126 = sadd.s32 %s125, 1
      %p129 = scmp.eq.s32.totalorder %s30, 1
      %p130 = scmp.ne.s32.totalorder %s125, %s127
      %p131 = scmp.eq.s32.totalorder %s30, 0
      %p132 = por %p130, %p131
      %p133 = scmp.ne.s32.totalorder %s125, %s127
      %p134 = scmp.eq.s32.totalorder %s35, 1
      %p135 = por %p133, %p134
      %p136 = scmp.ne.s32.totalorder %s127, %s128
      %p137 = scmp.eq.s32.totalorder %s35, 0
      %p138 = por %p136, %p137
      %p139 = scmp.ne.s32.totalorder %s127, %s128
      %p140 = scmp.eq.s32.totalorder %s36, 1
      %p141 = por %p139, %p140
      %p143 = scmp.ne.s32.totalorder %s128, %s142
      %p144 = scmp.eq.s32.totalorder %s36, 0
      %p145 = por %p143, %p144
      %s147 = sadd.s32 %s146, 1
      %p150 = scmp.eq.s32.totalorder %s30, 1
      %p151 = scmp.ne.s32.totalorder %s146, %s148
      %p152 = scmp.eq.s32.totalorder %s30, 0
      %p153 = por %p151, %p152
      %p154 = scmp.ne.s32.totalorder %s146, %s148
      %p155 = scmp.eq.s32.totalorder %s35, 1
      %p156 = por %p154, %p155
      %p157 = scmp.ne.s32.totalorder %s148, %s149
      %p158 = scmp.eq.s32.totalorder %s35, 0
      %p159 = por %p157, %p158
      %p160 = scmp.ne.s32.totalorder %s148, %s149
      %p161 = scmp.eq.s32.totalorder %s36, 1
      %p162 = por %p160, %p161
      %p164 = scmp.ne.s32.totalorder %s149, %s163
      %p165 = scmp.eq.s32.totalorder %s36, 0
      %p166 = por %p164, %p165
      %s168 = sadd.s32 %s167, 1
      %p171 = scmp.eq.s32.totalorder %s30, 1
      %p172 = scmp.ne.s32.totalorder %s167, %s169
      %p173 = scmp.eq.s32.totalorder %s30, 0
      %p174 = por %p172, %p173
      %p175 = scmp.ne.s32.totalorder %s167, %s169
      %p176 = scmp.eq.s32.totalorder %s35, 1
      %p177 = por %p175, %p176
      %p178 = scmp.ne.s32.totalorder %s169, %s170
      %p179 = scmp.eq.s32.totalorder %s35, 0
      %p180 = por %p178, %p179
      %p181 = scmp.ne.s32.totalorder %s169, %s170
      %p182 = scmp.eq.s32.totalorder %s36, 1
      %p183 = por %p181, %p182
      %p185 = scmp.ne.s32.totalorder %s170, %s184
      %p186 = scmp.eq.s32.totalorder %s36, 0
      %p187 = por %p185, %p186
      %s189 = sadd.s32 %s188, 1
      %p192 = scmp.eq.s32.totalorder %s30, 1
      %p193 = scmp.ne.s32.totalorder %s188, %s190
      %p194 = scmp.eq.s32.totalorder %s30, 0
      %p195 = por %p193, %p194
      %p196 = scmp.ne.s32.totalorder %s188, %s190
      %p197 = scmp.eq.s32.totalorder %s35, 1
      %p198 = por %p196, %p197
      %p199 = scmp.ne.s32.totalorder %s190, %s191
      %p200 = scmp.eq.s32.totalorder %s35, 0
      %p201 = por %p199, %p200
      %p202 = scmp.ne.s32.totalorder %s190, %s191
      %p203 = scmp.eq.s32.totalorder %s36, 1
      %p204 = por %p202, %p203
      %p206 = scmp.ne.s32.totalorder %s191, %s205
      %p207 = scmp.eq.s32.totalorder %s36, 0
      %p208 = por %p206, %p207
      %s210 = sadd.s32 %s209, 1
      %p213 = scmp.eq.s32.totalorder %s30, 1
      %p214 = scmp.ne.s32.totalorder %s209, %s211
      %p215 = scmp.eq.s32.totalorder %s30, 0
      %p216 = por %p214, %p215
      %p217 = scmp.ne.s32.totalorder %s209, %s211
      %p218 = scmp.eq.s32.totalorder %s35, 1
      %p219 = por %p217, %p218
      %p220 = scmp.ne.s32.totalorder %s211, %s212
      %p221 = scmp.eq.s32.totalorder %s35, 0
      %p222 = por %p220, %p221
      %p223 = scmp.ne.s32.totalorder %s211, %s212
      %p224 = scmp.eq.s32.totalorder %s36, 1
      %p225 = por %p223, %p224
      %p227 = scmp.ne.s32.totalorder %s212, %s226
      %p228 = scmp.eq.s32.totalorder %s36, 0
      %p229 = por %p227, %p228
      %s231 = sadd.s32 %s230, 1
      %p234 = scmp.eq.s32.totalorder %s30, 1
      %p235 = scmp.ne.s32.totalorder %s230, %s232
      %p236 = scmp.eq.s32.totalorder %s30, 0
      %p237 = por %p235, %p236
      %p238 = scmp.ne.s32.totalorder %s230, %s232
      %p239 = scmp.eq.s32.totalorder %s35, 1
      %p240 = por %p238, %p239
      %p241 = scmp.ne.s32.totalorder %s232, %s233
      %p242 = scmp.eq.s32.totalorder %s35, 0
      %p243 = por %p241, %p242
      %p244 = scmp.ne.s32.totalorder %s232, %s233
      %p245 = scmp.eq.s32.totalorder %s36, 1
      %p246 = por %p244, %p245
      %p248 = scmp.ne.s32.totalorder %s233, %s247
      %p249 = scmp.eq.s32.totalorder %s36, 0
      %p250 = por %p248, %p249
      %s252 = sadd.s32 %s251, 1
      %p255 = scmp.eq.s32.totalorder %s30, 1
      %p256 = scmp.ne.s32.totalorder %s251, %s253
      %p257 = scmp.eq.s32.totalorder %s30, 0
      %p258 = por %p256, %p257
      %p259 = scmp.ne.s32.totalorder %s251, %s253
      %p260 = scmp.eq.s32.totalorder %s35, 1
      %p261 = por %p259, %p260
      %p262 = scmp.ne.s32.totalorder %s253, %s254
      %p263 = scmp.eq.s32.totalorder %s35, 0
      %p264 = por %p262, %p263
      %p265 = scmp.ne.s32.totalorder %s253, %s254
      %p266 = scmp.eq.s32.totalorder %s36, 1
      %p267 = por %p265, %p266
      %p269 = scmp.ne.s32.totalorder %s254, %s268
      %p270 = scmp.eq.s32.totalorder %s36, 0
      %p271 = por %p269, %p270
      %s273 = sadd.s32 %s272, 1
      %p276 = scmp.eq.s32.totalorder %s30, 1
      %p277 = scmp.ne.s32.totalorder %s272, %s274
      %p278 = scmp.eq.s32.totalorder %s30, 0
      %p279 = por %p277, %p278
      %p280 = scmp.ne.s32.totalorder %s272, %s274
      %p281 = scmp.eq.s32.totalorder %s35, 1
      %p282 = por %p280, %p281
      %p283 = scmp.ne.s32.totalorder %s274, %s275
      %p284 = scmp.eq.s32.totalorder %s35, 0
      %p285 = por %p283, %p284
      %p286 = scmp.ne.s32.totalorder %s274, %s275
      %p287 = scmp.eq.s32.totalorder %s36, 1
      %p288 = por %p286, %p287
      %p290 = scmp.ne.s32.totalorder %s275, %s289
      %p291 = scmp.eq.s32.totalorder %s36, 0
      %p292 = por %p290, %p291
      %s294 = sadd.s32 %s293, 1
      %p297 = scmp.eq.s32.totalorder %s30, 1
      %p298 = scmp.ne.s32.totalorder %s293, %s295
      %p299 = scmp.eq.s32.totalorder %s30, 0
      %p300 = por %p298, %p299
      %p301 = scmp.ne.s32.totalorder %s293, %s295
      %p302 = scmp.eq.s32.totalorder %s35, 1
      %p303 = por %p301, %p302
      %p304 = scmp.ne.s32.totalorder %s295, %s296
      %p305 = scmp.eq.s32.totalorder %s35, 0
      %p306 = por %p304, %p305
      %p307 = scmp.ne.s32.totalorder %s295, %s296
      %p308 = scmp.eq.s32.totalorder %s36, 1
      %p309 = por %p307, %p308
      %p311 = scmp.ne.s32.totalorder %s296, %s310
      %p312 = scmp.eq.s32.totalorder %s36, 0
      %p313 = por %p311, %p312
      %s315 = sadd.s32 %s314, 1
      %p318 = scmp.eq.s32.totalorder %s30, 1
      %p319 = scmp.ne.s32.totalorder %s314, %s316
      %p320 = scmp.eq.s32.totalorder %s30, 0
      %p321 = por %p319, %p320
      %p322 = scmp.ne.s32.totalorder %s314, %s316
      %p323 = scmp.eq.s32.totalorder %s35, 1
      %p324 = por %p322, %p323
      %p325 = scmp.ne.s32.totalorder %s316, %s317
      %p326 = scmp.eq.s32.totalorder %s35, 0
      %p327 = por %p325, %p326
      %p328 = scmp.ne.s32.totalorder %s316, %s317
      %p329 = scmp.eq.s32.totalorder %s36, 1
      %p330 = por %p328, %p329
      %p332 = scmp.ne.s32.totalorder %s317, %s331
      %p333 = scmp.eq.s32.totalorder %s36, 0
      %p334 = por %p332, %p333
      %s336 = sadd.s32 %s335, 1
      %p339 = scmp.eq.s32.totalorder %s30, 1
      %p340 = scmp.ne.s32.totalorder %s335, %s337
      %p341 = scmp.eq.s32.totalorder %s30, 0
      %p342 = por %p340, %p341
      %p343 = scmp.ne.s32.totalorder %s335, %s337
      %p344 = scmp.eq.s32.totalorder %s35, 1
      %p345 = por %p343, %p344
      %p346 = scmp.ne.s32.totalorder %s337, %s338
      %p347 = scmp.eq.s32.totalorder %s35, 0
      %p348 = por %p346, %p347
      %p349 = scmp.ne.s32.totalorder %s337, %s338
      %p350 = scmp.eq.s32.totalorder %s36, 1
      %p351 = por %p349, %p350
      %p353 = scmp.ne.s32.totalorder %s338, %s352
      %p354 = scmp.eq.s32.totalorder %s36, 0
      %p355 = por %p353, %p354
      %s357 = sadd.s32 %s356, 1
      %p360 = scmp.eq.s32.totalorder %s30, 1
      %p361 = scmp.ne.s32.totalorder %s356, %s358
      %p362 = scmp.eq.s32.totalorder %s30, 0
      %p363 = por %p361, %p362
      %p364 = scmp.ne.s32.totalorder %s356, %s358
      %p365 = scmp.eq.s32.totalorder %s35, 1
      %p366 = por %p364, %p365
      %p367 = scmp.ne.s32.totalorder %s358, %s359
      %p368 = scmp.eq.s32.totalorder %s35, 0
      %p369 = por %p367, %p368
      %p370 = scmp.ne.s32.totalorder %s358, %s359
      %p371 = scmp.eq.s32.totalorder %s36, 1
      %p372 = por %p370, %p371
      %p374 = scmp.ne.s32.totalorder %s359, %s373
      %p375 = scmp.eq.s32.totalorder %s36, 0
      %p376 = por %p374, %p375
      %s378 = sadd.s32 %s377, 1
      %p381 = scmp.eq.s32.totalorder %s30, 1
      %p382 = scmp.ne.s32.totalorder %s377, %s379
      %p383 = scmp.eq.s32.totalorder %s30, 0
      %p384 = por %p382, %p383
      %p385 = scmp.ne.s32.totalorder %s377, %s379
      %p386 = scmp.eq.s32.totalorder %s35, 1
      %p387 = por %p385, %p386
      %p388 = scmp.ne.s32.totalorder %s379, %s380
      %p389 = scmp.eq.s32.totalorder %s35, 0
      %p390 = por %p388, %p389
      %p391 = scmp.ne.s32.totalorder %s379, %s380
      %p392 = scmp.eq.s32.totalorder %s36, 1
      %p393 = por %p391, %p392
      %p395 = scmp.ne.s32.totalorder %s380, %s394
      %p396 = scmp.eq.s32.totalorder %s36, 0
      %p397 = por %p395, %p396
      %s399 = sadd.s32 %s398, 1
      %p402 = scmp.eq.s32.totalorder %s30, 1
      %p403 = scmp.ne.s32.totalorder %s398, %s400
      %p404 = scmp.eq.s32.totalorder %s30, 0
      %p405 = por %p403, %p404
      %p406 = scmp.ne.s32.totalorder %s398, %s400
      %p407 = scmp.eq.s32.totalorder %s35, 1
      %p408 = por %p406, %p407
      %p409 = scmp.ne.s32.totalorder %s400, %s401
      %p410 = scmp.eq.s32.totalorder %s35, 0
      %p411 = por %p409, %p410
      %p412 = scmp.ne.s32.totalorder %s400, %s401
      %p413 = scmp.eq.s32.totalorder %s36, 1
      %p414 = por %p412, %p413
      %p416 = scmp.ne.s32.totalorder %s401, %s415
      %p417 = scmp.eq.s32.totalorder %s36, 0
      %p418 = por %p416, %p417
      %s420 = sadd.s32 %s419, 1
      %p423 = scmp.eq.s32.totalorder %s30, 1
      %p424 = scmp.ne.s32.totalorder %s419, %s421
      %p425 = scmp.eq.s32.totalorder %s30, 0
      %p426 = por %p424, %p425
      %p427 = scmp.ne.s32.totalorder %s419, %s421
      %p428 = scmp.eq.s32.totalorder %s35, 1
      %p429 = por %p427, %p428
      %p430 = scmp.ne.s32.totalorder %s421, %s422
      %p431 = scmp.eq.s32.totalorder %s35, 0
      %p432 = por %p430, %p431
      %p433 = scmp.ne.s32.totalorder %s421, %s422
      %p434 = scmp.eq.s32.totalorder %s36, 1
      %p435 = por %p433, %p434
      %p437 = scmp.ne.s32.totalorder %s422, %s436
      %p438 = scmp.eq.s32.totalorder %s36, 0
      %p439 = por %p437, %p438
      %s440 = ssub.s32 %s37, %s49
      %s441 = ssub.s32 %s38, %s45
      %s442 = sor.u32 %s440, %s441
      %p443 = scmp.eq.s32.totalorder %s442, 0
      %s445 = sadd.s32 %s444, 1
      %s446 = scalar_select %p443, %s444, %s445
      %p449 = pneg %p443
      %p450 = scmp.eq.s32.totalorder %s30, 1
      %p451 = por %p449, %p450
      %p452 = scmp.ne.s32.totalorder %s444, %s447
      %p453 = scmp.eq.s32.totalorder %s30, 0
      %p454 = por %p452, %p453
      %p455 = scmp.ne.s32.totalorder %s444, %s447
      %p456 = scmp.eq.s32.totalorder %s35, 1
      %p457 = por %p455, %p456
      %p458 = scmp.ne.s32.totalorder %s447, %s448
      %p459 = scmp.eq.s32.totalorder %s35, 0
      %p460 = por %p458, %p459
      %p461 = scmp.ne.s32.totalorder %s447, %s448
      %p462 = scmp.eq.s32.totalorder %s36, 1
      %p463 = por %p461, %p462
      %p465 = scmp.ne.s32.totalorder %s448, %s464
      %p466 = scmp.eq.s32.totalorder %s36, 0
      %p467 = por %p465, %p466
      %p468 = scmp.le.s32.totalorder 1, %s30
      %p469 = scmp.lt.s32.totalorder %s30, 3
      %p470 = pnand %p468, %p469
      %p471 = pneg %p470
      // Predicated region
      $region9: #{tpu_custom_call.1} parent=5 // pred_check
        _
      $region10: #{tpu_custom_call.1} parent=5 // pred_check_branch
        %473 = sbr.rel (%p470) target = $region12
      $region11: #{tpu_custom_call.1} parent=5 // pred_region
        %s474 = ssub.s32 %s30, 1
        // Predicated region
        $region13: #{tpu_custom_call.1} parent=11 // pred_check
          %p475 = pneg %p96
        $region14: #{tpu_custom_call.1} parent=11 // pred_check_branch
          %477 = sbr.rel (%p475) target = $region16
        $region15: #{tpu_custom_call.1} parent=11 // pred_region
          %p478 = scmp.lt.s32.totalorder %s39, 1
          %s479 = scalar_select %p478, %s39, 1
          %s480 = smul.addr %s479, 8
          %s481 = scalar_lea.vmem %s1, %s480
        $region16: #{tpu_custom_call.1} parent=11 // pred_fallthru
          _
        // Predicated region
        $region17: #{tpu_custom_call.1} parent=11 // pred_check
          %p482 = pneg %p117
        $region18: #{tpu_custom_call.1} parent=11 // pred_check_branch
          %484 = sbr.rel (%p482) target = $region20
        $region19: #{tpu_custom_call.1} parent=11 // pred_region
          _
        $region20: #{tpu_custom_call.1} parent=11 // pred_fallthru
          _
        // Predicated region
        $region21: #{tpu_custom_call.1} parent=11 // pred_check
          %p485 = pneg %p138
        $region22: #{tpu_custom_call.1} parent=11 // pred_check_branch
          %487 = sbr.rel (%p485) target = $region24
        $region23: #{tpu_custom_call.1} parent=11 // pred_region
          %489 = vsyncadd [#allocation5], 0
          %s490 = sshll.u32 %s3, 4
          %s491 = int_to_ptr.hbm [resolvable:$true] %s490
          %s492 = sshll.u32 [#allocation4], 4
          %s493 = int_to_ptr.vmem [resolvable:$true] %s492
          %498 = dma.hbm_to_vmem [thread:$0]  %s491, 256, %s493, [#allocation5], 64, 64, 4
        $region24: #{tpu_custom_call.1} parent=11 // pred_fallthru
          _
        // Predicated region
        $region25: #{tpu_custom_call.1} parent=11 // pred_check
          %p499 = pneg %p159
        $region26: #{tpu_custom_call.1} parent=11 // pred_check_branch
          %501 = sbr.rel (%p499) target = $region28
        $region27: #{tpu_custom_call.1} parent=11 // pred_region
          %503 = vsyncadd [#allocation8], 0
          %s504 = sshll.u32 %s4, 4
          %s505 = int_to_ptr.hbm [resolvable:$true] %s504
          %s506 = sshll.u32 [#allocation7], 4
          %s507 = int_to_ptr.vmem [resolvable:$true] %s506
          %512 = dma.hbm_to_vmem [thread:$0]  %s505, 256, %s507, [#allocation8], 64, 64, 4
        $region28: #{tpu_custom_call.1} parent=11 // pred_fallthru
          _
        // Predicated region
        $region29: #{tpu_custom_call.1} parent=11 // pred_check
          %p513 = pneg %p180
        $region30: #{tpu_custom_call.1} parent=11 // pred_check_branch
          %515 = sbr.rel (%p513) target = $region32
        $region31: #{tpu_custom_call.1} parent=11 // pred_region
          _
        $region32: #{tpu_custom_call.1} parent=11 // pred_fallthru
          _
        // Predicated region
        $region33: #{tpu_custom_call.1} parent=11 // pred_check
          %p516 = pneg %p201
        $region34: #{tpu_custom_call.1} parent=11 // pred_check_branch
          %518 = sbr.rel (%p516) target = $region36
        $region35: #{tpu_custom_call.1} parent=11 // pred_region
          _
        $region36: #{tpu_custom_call.1} parent=11 // pred_fallthru
          _
        // Predicated region
        $region37: #{tpu_custom_call.1} parent=11 // pred_check
          %p519 = pneg %p222
        $region38: #{tpu_custom_call.1} parent=11 // pred_check_branch
          %521 = sbr.rel (%p519) target = $region40
        $region39: #{tpu_custom_call.1} parent=11 // pred_region
          _
        $region40: #{tpu_custom_call.1} parent=11 // pred_fallthru
          _
        // Predicated region
        $region41: #{tpu_custom_call.1} parent=11 // pred_check
          %p522 = pneg %p243
        $region42: #{tpu_custom_call.1} parent=11 // pred_check_branch
          %524 = sbr.rel (%p522) target = $region44
        $region43: #{tpu_custom_call.1} parent=11 // pred_region
          %526 = vsyncadd [#allocation8], 0
          %s527 = sshll.u32 %s8, 4
          %s528 = int_to_ptr.hbm [resolvable:$true] %s527
          %s529 = sshll.u32 [#allocation9], 4
          %s530 = int_to_ptr.vmem [resolvable:$true] %s529
          %535 = dma.hbm_to_vmem [thread:$0]  %s528, 256, %s530, [#allocation8], 64, 64, 4
        $region44: #{tpu_custom_call.1} parent=11 // pred_fallthru
          _
        // Predicated region
        $region45: #{tpu_custom_call.1} parent=11 // pred_check
          %p536 = pneg %p264
        $region46: #{tpu_custom_call.1} parent=11 // pred_check_branch
          %538 = sbr.rel (%p536) target = $region48
        $region47: #{tpu_custom_call.1} parent=11 // pred_region
          _
        $region48: #{tpu_custom_call.1} parent=11 // pred_fallthru
          _
        // Predicated region
        $region49: #{tpu_custom_call.1} parent=11 // pred_check
          %p539 = pneg %p285
        $region50: #{tpu_custom_call.1} parent=11 // pred_check_branch
          %541 = sbr.rel (%p539) target = $region52
        $region51: #{tpu_custom_call.1} parent=11 // pred_region
          _
        $region52: #{tpu_custom_call.1} parent=11 // pred_fallthru
          _
        // Predicated region
        $region53: #{tpu_custom_call.1} parent=11 // pred_check
          %p542 = pneg %p306
        $region54: #{tpu_custom_call.1} parent=11 // pred_check_branch
          %544 = sbr.rel (%p542) target = $region56
        $region55: #{tpu_custom_call.1} parent=11 // pred_region
          _
        $region56: #{tpu_custom_call.1} parent=11 // pred_fallthru
          _
        // Predicated region
        $region57: #{tpu_custom_call.1} parent=11 // pred_check
          %p545 = pneg %p327
        $region58: #{tpu_custom_call.1} parent=11 // pred_check_branch
          %547 = sbr.rel (%p545) target = $region60
        $region59: #{tpu_custom_call.1} parent=11 // pred_region
          %549 = vsyncadd [#allocation11], 0
          %s550 = sshll.u32 %s12, 4
          %s551 = int_to_ptr.hbm [resolvable:$true] %s550
          %s552 = sshll.u32 [#allocation10], 4
          %s553 = int_to_ptr.vmem [resolvable:$true] %s552
          %558 = dma.hbm_to_vmem [thread:$0]  %s551, 256, %s553, [#allocation11], 64, 64, 4
        $region60: #{tpu_custom_call.1} parent=11 // pred_fallthru
          _
        // Predicated region
        $region61: #{tpu_custom_call.1} parent=11 // pred_check
          %p559 = pneg %p348
        $region62: #{tpu_custom_call.1} parent=11 // pred_check_branch
          %561 = sbr.rel (%p559) target = $region64
        $region63: #{tpu_custom_call.1} parent=11 // pred_region
          _
        $region64: #{tpu_custom_call.1} parent=11 // pred_fallthru
          _
        // Predicated region
        $region65: #{tpu_custom_call.1} parent=11 // pred_check
          %p562 = pneg %p369
        $region66: #{tpu_custom_call.1} parent=11 // pred_check_branch
          %564 = sbr.rel (%p562) target = $region68
        $region67: #{tpu_custom_call.1} parent=11 // pred_region
          _
        $region68: #{tpu_custom_call.1} parent=11 // pred_fallthru
          _
        // Predicated region
        $region69: #{tpu_custom_call.1} parent=11 // pred_check
          %p565 = pneg %p390
        $region70: #{tpu_custom_call.1} parent=11 // pred_check_branch
          %567 = sbr.rel (%p565) target = $region72
        $region71: #{tpu_custom_call.1} parent=11 // pred_region
          _
        $region72: #{tpu_custom_call.1} parent=11 // pred_fallthru
          _
        // Predicated region
        $region73: #{tpu_custom_call.1} parent=11 // pred_check
          %p568 = pneg %p411
        $region74: #{tpu_custom_call.1} parent=11 // pred_check_branch
          %570 = sbr.rel (%p568) target = $region76
        $region75: #{tpu_custom_call.1} parent=11 // pred_region
          _
        $region76: #{tpu_custom_call.1} parent=11 // pred_fallthru
          _
        // Predicated region
        $region77: #{tpu_custom_call.1} parent=11 // pred_check
          %p571 = pneg %p432
        $region78: #{tpu_custom_call.1} parent=11 // pred_check_branch
          %573 = sbr.rel (%p571) target = $region80
        $region79: #{tpu_custom_call.1} parent=11 // pred_region
          _
        $region80: #{tpu_custom_call.1} parent=11 // pred_fallthru
          _
      $region12: #{tpu_custom_call.1} parent=5 // pred_fallthru
        _
      %p574 = scmp.lt.s32.totalorder %s30, 2
      // Predicated region
      $region81: #{tpu_custom_call.1} parent=5 // pred_check
        %p575 = pneg %p574
      $region82: #{tpu_custom_call.1} parent=5 // pred_check_branch
        %577 = sbr.rel (%p575) target = $region84
      $region83: #{tpu_custom_call.1} parent=5 // pred_region
        // Predicated region
        $region85: #{tpu_custom_call.1} parent=83 // pred_check
          %p578 = pneg %p64
        $region86: #{tpu_custom_call.1} parent=83 // pred_check_branch
          %580 = sbr.rel (%p578) target = $region88
        $region87: #{tpu_custom_call.1} parent=83 // pred_region
          %p581 = scmp.lt.s32.totalorder %s37, 1
          %s582 = scalar_select %p581, %s37, 1
          %p583 = scmp.lt.s32.totalorder %s38, 0
          %s584 = scalar_select %p583, %s38, 0
          %s585 = sadd.s32 %s584, %s582
          %s586 = smul.addr %s585, 8
          %s587 = scalar_lea.vmem %s0, %s586
        $region88: #{tpu_custom_call.1} parent=83 // pred_fallthru
          _
      $region84: #{tpu_custom_call.1} parent=5 // pred_fallthru
        _
      %p588 = scmp.le.s32.totalorder 1, %s30
      %p589 = scmp.lt.s32.totalorder %s30, 3
      %p590 = pnand %p588, %p589
      %p591 = pneg %p590
      // Predicated region
      $region89: #{tpu_custom_call.1} parent=5 // pred_check
        _
      $region90: #{tpu_custom_call.1} parent=5 // pred_check_branch
        %593 = sbr.rel (%p590) target = $region92
      $region91: #{tpu_custom_call.1} parent=5 // pred_region
        %s594 = ssub.s32 %s30, 1
        // Predicated region
        $region93: #{tpu_custom_call.1} parent=91 // pred_check
          %p595 = pneg %p138
        $region94: #{tpu_custom_call.1} parent=91 // pred_check_branch
          %597 = sbr.rel (%p595) target = $region96
        $region95: #{tpu_custom_call.1} parent=91 // pred_region
          %599 = dma.done [#allocation5], 256
        $region96: #{tpu_custom_call.1} parent=91 // pred_fallthru
          _
        // Predicated region
        $region97: #{tpu_custom_call.1} parent=91 // pred_check
          %p600 = pneg %p159
        $region98: #{tpu_custom_call.1} parent=91 // pred_check_branch
          %602 = sbr.rel (%p600) target = $region100
        $region99: #{tpu_custom_call.1} parent=91 // pred_region
          %604 = dma.done [#allocation8], 256
        $region100: #{tpu_custom_call.1} parent=91 // pred_fallthru
          _
        // Predicated region
        $region101: #{tpu_custom_call.1} parent=91 // pred_check
          %p605 = pneg %p243
        $region102: #{tpu_custom_call.1} parent=91 // pred_check_branch
          %607 = sbr.rel (%p605) target = $region104
        $region103: #{tpu_custom_call.1} parent=91 // pred_region
          %609 = dma.done [#allocation8], 256
        $region104: #{tpu_custom_call.1} parent=91 // pred_fallthru
          _
        // Predicated region
        $region105: #{tpu_custom_call.1} parent=91 // pred_check
          %p610 = pneg %p327
        $region106: #{tpu_custom_call.1} parent=91 // pred_check_branch
          %612 = sbr.rel (%p610) target = $region108
        $region107: #{tpu_custom_call.1} parent=91 // pred_region
          %614 = dma.done [#allocation11], 256
        $region108: #{tpu_custom_call.1} parent=91 // pred_fallthru
          _
        %p615 = scmp.lt.s32.totalorder %s39, 1
        %s616 = scalar_select %p615, %s39, 1
        %p617 = scmp.lt.s32.totalorder %s40, 0
        %s618 = scalar_select %p617, %s40, 0
        %s619 = sadd.s32 %s618, %s616
        %s620 = smul.addr %s619, 8
        %s621 = scalar_lea.vmem %s0, %s620
        %p622 = pneg %p70
        %p623 = pneg %p67
        %p624 = scmp.lt.s32.totalorder %s39, 1
        %s625 = scalar_select %p624, %s39, 1
        %s626 = smul.addr %s625, 8
        %s627 = scalar_lea.vmem %s1, %s626
        %p628 = pneg %p96
        %p629 = pneg %p93
        %p630 = pneg %p117
        %p631 = pneg %p114
        %p632 = pneg %p138
        %p633 = pneg %p135
        %p634 = pneg %p159
        %p635 = pneg %p156
        %p636 = pneg %p180
        %p637 = pneg %p177
        %p638 = pneg %p201
        %p639 = pneg %p198
        %p640 = pneg %p222
        %p641 = pneg %p219
        %p642 = pneg %p243
        %p643 = pneg %p240
        %p644 = pneg %p264
        %p645 = pneg %p261
        %p646 = pneg %p285
        %p647 = pneg %p282
        %p648 = pneg %p306
        %p649 = pneg %p303
        %p650 = pneg %p327
        %p651 = pneg %p324
        %p652 = pneg %p348
        %p653 = pneg %p345
        %p654 = pneg %p369
        %p655 = pneg %p366
        %p656 = pneg %p390
        %p657 = pneg %p387
        %p658 = pneg %p411
        %p659 = pneg %p408
        %p660 = pneg %p432
        %p661 = pneg %p429
        %p662 = pneg %p460
        %p663 = pneg %p457
        %s664 = sand.u32 %s447, 1
        %s665 = scalar_lea.sflag [#allocation6], %s664
        %s666 = sand.u32 %s447, 1
        %s667 = smul.addr %s666, 8
        %s668 = scalar_lea.vmem [#allocation12], %s667
        %p669 = scmp.lt.s32.totalorder %s39, 1
        %s670 = scalar_select %p669, %s39, 1
        %p671 = scmp.lt.s32.totalorder %s40, 0
        %s672 = scalar_select %p671, %s40, 0
        %s673 = sadd.s32 %s672, %s670
        %s674 = smul.addr %s673, 8
        %s675 = scalar_lea.vmem %s0, %s674
        %p676 = scmp.lt.s32.totalorder %s39, 1
        %s677 = scalar_select %p676, %s39, 1
        %s678 = smul.addr %s677, 8
        %s679 = scalar_lea.vmem %s1, %s678
        %p681 = scmp.eq.s32.totalorder %s40, 0
        // Predicated region
        $region109: #{tpu_custom_call.1} parent=91 // pred_check
          %p682 = pneg %p681
        $region110: #{tpu_custom_call.1} parent=91 // pred_check_branch
          %684 = sbr.rel (%p682) target = $region112
        $region111: #{tpu_custom_call.1} parent=91 // pred_region
          %v685 = vld [vmem:[%s679] sm:$0xff]
          %v686 = vpack.c.bf16 %v685, %v685
          %v687 = vld [vmem:[#allocation4] sm:$0xf]
          %v688 = vld [vmem:[#allocation4 + $0x4] sm:$0xf]
          %v689 = vld [vmem:[#allocation4 + $0x8] sm:$0xf]
          %v690 = vld [vmem:[#allocation4 + $0xc] sm:$0xf]
          %v691 = vld [vmem:[%s6] sm:$0x1]
          %v693 = vperm.slane %v691, 0
          %v699 = vunpack.c.l.b16 %v687
          %v700 = vunpack.c.l.b16 %v688
          %v701 = vunpack.c.l.b16 %v689
          %v702 = vunpack.c.l.b16 %v690
          %v703 = vpack.c.b16 %v700, %v699
          %v704 = vpack.c.b16 %v702, %v701
          %vm705 = vcmask 261120
          %v707 = vsel %vm705, %v686, 0
          %v710 = vsel %vm705, %v703, 0
          %v713 = vsel %vm705, %v704, 0
          %715 = vmatpush.bf16.xpose.msra.mxu0 0
          %716 = vmatpush.bf16.xpose.msra.mxu0 0
          %717 = vmatpush.bf16.xpose.msra.mxu0 0
          %718 = vmatpush.bf16.xpose.msra.mxu0 0
          %719 = vmatpush.bf16.xpose.msra.mxu0 0
          %720 = vmatpush.bf16.xpose.msra.mxu0 0
          %721 = vmatpush.bf16.xpose.msra.mxu0 %v713
          %722 = vmatpush.bf16.xpose.msra.mxu0 %v710
          %723 = vmatmul.bf16.gmra.mxu0 %v707
          %v724 = vpop.f32.mrf.mxu0
          %v725 = vadd.f32 %v693, %v724
          %v726 = vpop.f32.mrf.mxu0
          %727 = vdwg.mxu0
          %v728 = vpack.c.bf16 %v725, %v725
          %vm729 = vcmask 257024
          %730 = vst.msk [vmem:[#allocation2] sm:$0xf] %vm729, %v728
          %v731 = vld [vmem:[#allocation7] sm:$0xf]
          %v732 = vld [vmem:[#allocation7 + $0x4] sm:$0xf]
          %v733 = vld [vmem:[#allocation7 + $0x8] sm:$0xf]
          %v734 = vld [vmem:[#allocation7 + $0xc] sm:$0xf]
          %v735 = vld [vmem:[%s7] sm:$0x1]
          %v737 = vperm.slane %v735, 0
          %v743 = vunpack.c.l.b16 %v731
          %v744 = vunpack.c.l.b16 %v732
          %v745 = vunpack.c.l.b16 %v733
          %v746 = vunpack.c.l.b16 %v734
          %v747 = vpack.c.b16 %v744, %v743
          %v748 = vpack.c.b16 %v746, %v745
          %v750 = vsel %vm705, %v747, 0
          %v753 = vsel %vm705, %v748, 0
          %755 = vmatpush.bf16.xpose.msra.mxu0 0
          %756 = vmatpush.bf16.xpose.msra.mxu0 0
          %757 = vmatpush.bf16.xpose.msra.mxu0 0
          %758 = vmatpush.bf16.xpose.msra.mxu0 0
          %759 = vmatpush.bf16.xpose.msra.mxu0 0
          %760 = vmatpush.bf16.xpose.msra.mxu0 0
          %761 = vmatpush.bf16.xpose.msra.mxu0 %v753
          %762 = vmatpush.bf16.xpose.msra.mxu0 %v750
          %763 = vmatmul.bf16.gmra.mxu0 %v707
          %v764 = vpop.f32.mrf.mxu0
          %v765 = vadd.f32 %v737, %v764
          %v766 = vpop.f32.mrf.mxu0
          %767 = vdwg.mxu0
          %v768 = vpack.c.bf16 %v765, %v765
          %769 = vst.msk [vmem:[#allocation3] sm:$0xf] %vm729, %v768
        $region112: #{tpu_custom_call.1} parent=91 // pred_fallthru
          _
        %v770 = vld [vmem:[%s675] sm:$0xff]
        %v771 = vpack.c.bf16 %v770, %v770
        %v772 = vld [vmem:[%s2] sm:$0xf]
        %v773 = vld [vmem:[%s2 + $0x4] sm:$0xf]
        %v774 = vld [vmem:[%s2 + $0x8] sm:$0xf]
        %v775 = vld [vmem:[%s2 + $0xc] sm:$0xf]
        %v776 = vld [vmem:[%s5] sm:$0x1]
        %v778 = vperm.slane %v776, 0
        %v784 = vunpack.c.l.b16 %v772
        %v785 = vunpack.c.l.b16 %v773
        %v786 = vunpack.c.l.b16 %v774
        %v787 = vunpack.c.l.b16 %v775
        %v788 = vpack.c.b16 %v785, %v784
        %v789 = vpack.c.b16 %v787, %v786
        %vm790 = vcmask 261120
        %v792 = vsel %vm790, %v771, 0
        %v795 = vsel %vm790, %v788, 0
        %v798 = vsel %vm790, %v789, 0
        %800 = vmatpush.bf16.xpose.msra.mxu0 0
        %801 = vmatpush.bf16.xpose.msra.mxu0 0
        %802 = vmatpush.bf16.xpose.msra.mxu0 0
        %803 = vmatpush.bf16.xpose.msra.mxu0 0
        %804 = vmatpush.bf16.xpose.msra.mxu0 0
        %805 = vmatpush.bf16.xpose.msra.mxu0 0
        %806 = vmatpush.bf16.xpose.msra.mxu0 %v798
        %807 = vmatpush.bf16.xpose.msra.mxu0 %v795
        %808 = vmatmul.bf16.gmra.mxu0 %v792
        %v809 = vpop.f32.mrf.mxu0
        %v810 = vadd.f32 %v778, %v809
        %v811 = vpop.f32.mrf.mxu0
        %812 = vdwg.mxu0
        %v813 = vmul.f32 %v810, 0.35355338
        %v814 = vpack.c.bf16 %v813, %v813
        %v815 = vld [vmem:[#allocation2] sm:$0xf]
        %v816 = vld [vmem:[#allocation3] sm:$0xf]
        %vm817 = vcmask 64512
        %v819 = vsel %vm817, %v814, 0
        %v822 = vsel %vm817, %v815, 0
        %824 = vmatpush.bf16.xpose.msra.mxu0 0
        %825 = vmatpush.bf16.xpose.msra.mxu0 0
        %826 = vmatpush.bf16.xpose.msra.mxu0 0
        %827 = vmatpush.bf16.xpose.msra.mxu0 0
        %828 = vmatpush.bf16.xpose.msra.mxu0 0
        %829 = vmatpush.bf16.xpose.msra.mxu0 0
        %830 = vmatpush.bf16.xpose.msra.mxu0 0
        %831 = vmatpush.bf16.xpose.msra.mxu0 %v822
        %832 = vmatmul.bf16.gmra.mxu0 %v819
        %v833 = vpop.f32.mrf.mxu0
        %v834 = vadd.f32 0.0, %v833
        %v835 = vpop.f32.mrf.mxu0
        %836 = vdwg.mxu0
        %v837 = vsel %vm817, %v834, -inf
        %838 = vmax.xlane.f32.xlu0 %v837
        %v839 = vpop.xlane.xlu0 %838
        %v840 = vsub.f32 %v834, %v839
        %v841 = vmul.f32 %v840, 1.442695
        %v842 = vpow.pop %v841
        %v843 = vsel %vm817, %v842, 0.0
        %844 = vadd.xlane.f32.xlu0 %v843
        %v845 = vpop.xlane.xlu0 %844
        %v846 = vpack.c.bf16 %v842, %v842
        %v848 = vsel %vm817, %v846, 0
        %vm850 = vcmask 1043456
        %v852 = vsel %vm850, %v816, 0
        %854 = vmatpush.bf16.msra.mxu0 0
        %855 = vmatpush.bf16.msra.mxu0 0
        %856 = vmatpush.bf16.msra.mxu0 0
        %857 = vmatpush.bf16.msra.mxu0 0
        %858 = vmatpush.bf16.msra.mxu0 0
        %859 = vmatpush.bf16.msra.mxu0 0
        %860 = vmatpush.bf16.msra.mxu0 0
        %861 = vmatpush.bf16.msra.mxu0 %v852
        %862 = vmatmul.bf16.gmra.mxu0 %v848
        %v863 = vpop.f32.mrf.mxu0
        %v864 = vadd.f32 0.0, %v863
        %v865 = vpop.f32.mrf.mxu0
        %866 = vdwg.mxu0
        %v867 = vrcp.pop %v845
        %v868 = vmul.f32 %v864, %v867
        %v869 = vpack.c.bf16 %v868, %v868
        %v870 = vld [vmem:[#allocation9] sm:$0xf]
        %v871 = vld [vmem:[#allocation9 + $0x4] sm:$0xf]
        %v872 = vld [vmem:[#allocation9 + $0x8] sm:$0xf]
        %v873 = vld [vmem:[#allocation9 + $0xc] sm:$0xf]
        %v875 = vunpack.c.l.b16 %v814
        %v876 = vpack.c.b16 %v875, %v875
        %877 = vrot.lane.b32.xlu0 %v876, 120
        %v878 = vpop.permute.xlu0 %877
        %v880 = vunpack.c.l.b16 %v815
        %v881 = vpack.c.b16 %v880, %v880
        %882 = vrot.lane.b32.xlu0 %v881, 120
        %v883 = vpop.permute.xlu0 %882
        %v885 = vsel %vm817, %v878, 0
        %v888 = vsel %vm817, %v883, 0
        %890 = vmatpush.bf16.xpose.msra.mxu0 0
        %891 = vmatpush.bf16.xpose.msra.mxu0 0
        %892 = vmatpush.bf16.xpose.msra.mxu0 0
        %893 = vmatpush.bf16.xpose.msra.mxu0 0
        %894 = vmatpush.bf16.xpose.msra.mxu0 0
        %895 = vmatpush.bf16.xpose.msra.mxu0 0
        %896 = vmatpush.bf16.xpose.msra.mxu0 0
        %897 = vmatpush.bf16.xpose.msra.mxu0 %v888
        %898 = vmatmul.bf16.gmra.mxu0 %v885
        %v899 = vpop.f32.mrf.mxu0
        %v900 = vadd.f32 0.0, %v899
        %v901 = vpop.f32.mrf.mxu0
        %902 = vdwg.mxu0
        %v903 = vsel %vm817, %v900, -inf
        %904 = vmax.xlane.f32.xlu0 %v903
        %v905 = vpop.xlane.xlu0 %904
        %v906 = vsub.f32 %v900, %v905
        %v907 = vmul.f32 %v906, 1.442695
        %v908 = vpow.pop %v907
        %v909 = vsel %vm817, %v908, 0.0
        %910 = vadd.xlane.f32.xlu0 %v909
        %v911 = vpop.xlane.xlu0 %910
        %v912 = vpack.c.bf16 %v908, %v908
        %v914 = vunpack.c.l.b16 %v816
        %v915 = vpack.c.b16 %v914, %v914
        %916 = vrot.lane.b32.xlu0 %v915, 120
        %v917 = vpop.permute.xlu0 %916
        %v919 = vsel %vm817, %v912, 0
        %v922 = vsel %vm850, %v917, 0
        %924 = vmatpush.bf16.msra.mxu0 0
        %925 = vmatpush.bf16.msra.mxu0 0
        %926 = vmatpush.bf16.msra.mxu0 0
        %927 = vmatpush.bf16.msra.mxu0 0
        %928 = vmatpush.bf16.msra.mxu0 0
        %929 = vmatpush.bf16.msra.mxu0 0
        %930 = vmatpush.bf16.msra.mxu0 0
        %931 = vmatpush.bf16.msra.mxu0 %v922
        %932 = vmatmul.bf16.gmra.mxu0 %v919
        %v933 = vpop.f32.mrf.mxu0
        %v934 = vadd.f32 0.0, %v933
        %v935 = vpop.f32.mrf.mxu0
        %936 = vdwg.mxu0
        %v937 = vrcp.pop %v911
        %v938 = vmul.f32 %v934, %v937
        %v939 = vpack.c.bf16 %v938, %v938
        %v944 = vunpack.c.l.b16 %v870
        %v945 = vunpack.c.l.b16 %v871
        %v946 = vunpack.c.l.b16 %v872
        %v947 = vunpack.c.l.b16 %v873
        %v948 = vpack.c.b16 %v945, %v944
        %v949 = vpack.c.b16 %v947, %v946
        %950 = vrot.lane.b32.xlu0 %v948, 120
        %v951 = vpop.permute.xlu0 %950
        %952 = vrot.lane.b32.xlu0 %v949, 120
        %v953 = vpop.permute.xlu0 %952
        %v955 = vsel %vm817, %v939, 0
        %v958 = vsel %vm817, %v951, 0
        %v961 = vsel %vm817, %v953, 0
        %963 = vmatpush.bf16.xpose.msra.mxu0 0
        %964 = vmatpush.bf16.xpose.msra.mxu0 0
        %965 = vmatpush.bf16.xpose.msra.mxu0 0
        %966 = vmatpush.bf16.xpose.msra.mxu0 0
        %967 = vmatpush.bf16.xpose.msra.mxu0 0
        %968 = vmatpush.bf16.xpose.msra.mxu0 0
        %969 = vmatpush.bf16.xpose.msra.mxu0 %v961
        %970 = vmatpush.bf16.xpose.msra.mxu0 %v958
        %971 = vmatmul.bf16.gmra.mxu0 %v955
        %v972 = vpop.f32.mrf.mxu0
        %v973 = vadd.f32 0.0, %v972
        %v974 = vpop.f32.mrf.mxu0
        %975 = vdwg.mxu0
        %v977 = vsel %vm817, %v869, 0
        %v980 = vsel %vm817, %v948, 0
        %v983 = vsel %vm817, %v949, 0
        %985 = vmatpush.bf16.xpose.msra.mxu0 0
        %986 = vmatpush.bf16.xpose.msra.mxu0 0
        %987 = vmatpush.bf16.xpose.msra.mxu0 0
        %988 = vmatpush.bf16.xpose.msra.mxu0 0
        %989 = vmatpush.bf16.xpose.msra.mxu0 0
        %990 = vmatpush.bf16.xpose.msra.mxu0 0
        %991 = vmatpush.bf16.xpose.msra.mxu0 %v983
        %992 = vmatpush.bf16.xpose.msra.mxu0 %v980
        %993 = vmatmul.bf16.gmra.mxu0 %v977
        %v994 = vpop.f32.mrf.mxu0
        %v995 = vadd.f32 %v973, %v994
        %v996 = vpop.f32.mrf.mxu0
        %997 = vdwg.mxu0
        %998 = vrot.lane.b32.xlu0 %v876, 112
        %v999 = vpop.permute.xlu0 %998
        %1000 = vrot.lane.b32.xlu0 %v881, 112
        %v1001 = vpop.permute.xlu0 %1000
        %v1003 = vsel %vm817, %v999, 0
        %v1006 = vsel %vm817, %v1001, 0
        %1008 = vmatpush.bf16.xpose.msra.mxu0 0
        %1009 = vmatpush.bf16.xpose.msra.mxu0 0
        %1010 = vmatpush.bf16.xpose.msra.mxu0 0
        %1011 = vmatpush.bf16.xpose.msra.mxu0 0
        %1012 = vmatpush.bf16.xpose.msra.mxu0 0
        %1013 = vmatpush.bf16.xpose.msra.mxu0 0
        %1014 = vmatpush.bf16.xpose.msra.mxu0 0
        %1015 = vmatpush.bf16.xpose.msra.mxu0 %v1006
        %1016 = vmatmul.bf16.gmra.mxu0 %v1003
        %v1017 = vpop.f32.mrf.mxu0
        %v1018 = vadd.f32 0.0, %v1017
        %v1019 = vpop.f32.mrf.mxu0
        %1020 = vdwg.mxu0
        %v1021 = vsel %vm817, %v1018, -inf
        %1022 = vmax.xlane.f32.xlu0 %v1021
        %v1023 = vpop.xlane.xlu0 %1022
        %v1024 = vsub.f32 %v1018, %v1023
        %v1025 = vmul.f32 %v1024, 1.442695
        %v1026 = vpow.pop %v1025
        %v1027 = vsel %vm817, %v1026, 0.0
        %1028 = vadd.xlane.f32.xlu0 %v1027
        %v1029 = vpop.xlane.xlu0 %1028
        %v1030 = vpack.c.bf16 %v1026, %v1026
        %1031 = vrot.lane.b32.xlu0 %v915, 112
        %v1032 = vpop.permute.xlu0 %1031
        %v1034 = vsel %vm817, %v1030, 0
        %v1037 = vsel %vm850, %v1032, 0
        %1039 = vmatpush.bf16.msra.mxu0 0
        %1040 = vmatpush.bf16.msra.mxu0 0
        %1041 = vmatpush.bf16.msra.mxu0 0
        %1042 = vmatpush.bf16.msra.mxu0 0
        %1043 = vmatpush.bf16.msra.mxu0 0
        %1044 = vmatpush.bf16.msra.mxu0 0
        %1045 = vmatpush.bf16.msra.mxu0 0
        %1046 = vmatpush.bf16.msra.mxu0 %v1037
        %1047 = vmatmul.bf16.gmra.mxu0 %v1034
        %v1048 = vpop.f32.mrf.mxu0
        %v1049 = vadd.f32 0.0, %v1048
        %v1050 = vpop.f32.mrf.mxu0
        %1051 = vdwg.mxu0
        %v1052 = vrcp.pop %v1029
        %v1053 = vmul.f32 %v1049, %v1052
        %v1054 = vpack.c.bf16 %v1053, %v1053
        %1055 = vrot.lane.b32.xlu0 %v948, 112
        %v1056 = vpop.permute.xlu0 %1055
        %1057 = vrot.lane.b32.xlu0 %v949, 112
        %v1058 = vpop.permute.xlu0 %1057
        %v1060 = vsel %vm817, %v1054, 0
        %v1063 = vsel %vm817, %v1056, 0
        %v1066 = vsel %vm817, %v1058, 0
        %1068 = vmatpush.bf16.xpose.msra.mxu0 0
        %1069 = vmatpush.bf16.xpose.msra.mxu0 0
        %1070 = vmatpush.bf16.xpose.msra.mxu0 0
        %1071 = vmatpush.bf16.xpose.msra.mxu0 0
        %1072 = vmatpush.bf16.xpose.msra.mxu0 0
        %1073 = vmatpush.bf16.xpose.msra.mxu0 0
        %1074 = vmatpush.bf16.xpose.msra.mxu0 %v1066
        %1075 = vmatpush.bf16.xpose.msra.mxu0 %v1063
        %1076 = vmatmul.bf16.gmra.mxu0 %v1060
        %v1077 = vpop.f32.mrf.mxu0
        %v1078 = vadd.f32 0.0, %v1077
        %v1079 = vpop.f32.mrf.mxu0
        %1080 = vdwg.mxu0
        %v1081 = vadd.f32 %v995, %v1078
        %1082 = vrot.lane.b32.xlu0 %v876, 104
        %v1083 = vpop.permute.xlu0 %1082
        %1084 = vrot.lane.b32.xlu0 %v881, 104
        %v1085 = vpop.permute.xlu0 %1084
        %v1087 = vsel %vm817, %v1083, 0
        %v1090 = vsel %vm817, %v1085, 0
        %1092 = vmatpush.bf16.xpose.msra.mxu0 0
        %1093 = vmatpush.bf16.xpose.msra.mxu0 0
        %1094 = vmatpush.bf16.xpose.msra.mxu0 0
        %1095 = vmatpush.bf16.xpose.msra.mxu0 0
        %1096 = vmatpush.bf16.xpose.msra.mxu0 0
        %1097 = vmatpush.bf16.xpose.msra.mxu0 0
        %1098 = vmatpush.bf16.xpose.msra.mxu0 0
        %1099 = vmatpush.bf16.xpose.msra.mxu0 %v1090
        %1100 = vmatmul.bf16.gmra.mxu0 %v1087
        %v1101 = vpop.f32.mrf.mxu0
        %v1102 = vadd.f32 0.0, %v1101
        %v1103 = vpop.f32.mrf.mxu0
        %1104 = vdwg.mxu0
        %v1105 = vsel %vm817, %v1102, -inf
        %1106 = vmax.xlane.f32.xlu0 %v1105
        %v1107 = vpop.xlane.xlu0 %1106
        %v1108 = vsub.f32 %v1102, %v1107
        %v1109 = vmul.f32 %v1108, 1.442695
        %v1110 = vpow.pop %v1109
        %v1111 = vsel %vm817, %v1110, 0.0
        %1112 = vadd.xlane.f32.xlu0 %v1111
        %v1113 = vpop.xlane.xlu0 %1112
        %v1114 = vpack.c.bf16 %v1110, %v1110
        %1115 = vrot.lane.b32.xlu0 %v915, 104
        %v1116 = vpop.permute.xlu0 %1115
        %v1118 = vsel %vm817, %v1114, 0
        %v1121 = vsel %vm850, %v1116, 0
        %1123 = vmatpush.bf16.msra.mxu0 0
        %1124 = vmatpush.bf16.msra.mxu0 0
        %1125 = vmatpush.bf16.msra.mxu0 0
        %1126 = vmatpush.bf16.msra.mxu0 0
        %1127 = vmatpush.bf16.msra.mxu0 0
        %1128 = vmatpush.bf16.msra.mxu0 0
        %1129 = vmatpush.bf16.msra.mxu0 0
        %1130 = vmatpush.bf16.msra.mxu0 %v1121
        %1131 = vmatmul.bf16.gmra.mxu0 %v1118
        %v1132 = vpop.f32.mrf.mxu0
        %v1133 = vadd.f32 0.0, %v1132
        %v1134 = vpop.f32.mrf.mxu0
        %1135 = vdwg.mxu0
        %v1136 = vrcp.pop %v1113
        %v1137 = vmul.f32 %v1133, %v1136
        %v1138 = vpack.c.bf16 %v1137, %v1137
        %1139 = vrot.lane.b32.xlu0 %v948, 104
        %v1140 = vpop.permute.xlu0 %1139
        %1141 = vrot.lane.b32.xlu0 %v949, 104
        %v1142 = vpop.permute.xlu0 %1141
        %v1144 = vsel %vm817, %v1138, 0
        %v1147 = vsel %vm817, %v1140, 0
        %v1150 = vsel %vm817, %v1142, 0
        %1152 = vmatpush.bf16.xpose.msra.mxu0 0
        %1153 = vmatpush.bf16.xpose.msra.mxu0 0
        %1154 = vmatpush.bf16.xpose.msra.mxu0 0
        %1155 = vmatpush.bf16.xpose.msra.mxu0 0
        %1156 = vmatpush.bf16.xpose.msra.mxu0 0
        %1157 = vmatpush.bf16.xpose.msra.mxu0 0
        %1158 = vmatpush.bf16.xpose.msra.mxu0 %v1150
        %1159 = vmatpush.bf16.xpose.msra.mxu0 %v1147
        %1160 = vmatmul.bf16.gmra.mxu0 %v1144
        %v1161 = vpop.f32.mrf.mxu0
        %v1162 = vadd.f32 0.0, %v1161
        %v1163 = vpop.f32.mrf.mxu0
        %1164 = vdwg.mxu0
        %v1165 = vadd.f32 %v1081, %v1162
        %v1166 = vld [vmem:[%s9] sm:$0x1]
        %v1168 = vperm.slane %v1166, 0
        %v1170 = vadd.f32 %v1165, %v1168
        %v1171 = vadd.f32 %v770, %v1170
        %v1172 = vld [vmem:[%s14] sm:$0x1]
        %v1173 = vld [vmem:[%s15] sm:$0x1]
        %v1174 = vsel %vm790, %v1171, 0.0
        %1175 = vadd.xlane.f32.xlu0 %v1174
        %v1176 = vpop.xlane.xlu0 %1175
        %v1177 = vrcp.pop 32.0
        %v1178 = vmul.f32 32.0, %v1177
        %v1179 = vsub.f32 1.0, %v1178
        %v1180 = vmul.f32 %v1177, %v1179
        %v1181 = vadd.f32 %v1177, %v1180
        %vm1182 = vweird.f32 %v1177
        %v1183 = vsel %vm1182, %v1177, %v1181
        %v1184 = vmul.f32 %v1176, %v1183
        %v1185 = vmul.f32 %v1171, %v1171
        %v1186 = vsel %vm790, %v1185, 0.0
        %1187 = vadd.xlane.f32.xlu0 %v1186
        %v1188 = vpop.xlane.xlu0 %1187
        %v1189 = vmul.f32 %v1188, %v1183
        %v1190 = vsub.f32 %v1171, %v1184
        %v1191 = vmul.f32 %v1184, %v1184
        %v1192 = vsub.f32 %v1189, %v1191
        %v1193 = vadd.f32 %v1192, 1e-05
        %v1194 = vrsqrt.pop %v1193
        %v1195 = vmul.f32 %v1194, %v1193
        %v1196 = vmul.f32 %v1195, %v1194
        %v1197 = vmul.f32 0.5, %v1196
        %v1198 = vsub.f32 1.5, %v1197
        %v1199 = vmul.f32 %v1194, %v1198
        %vm1200 = vweird.f32 %v1193
        %vm1201 = vweird.f32 %v1194
        %vm1202 = vmor %vm1200, %vm1201
        %v1203 = vsel %vm1202, %v1194, %v1199
        %v1204 = vmul.f32 %v1190, %v1203
        %v1206 = vperm.slane %v1172, 0
        %v1208 = vmul.f32 %v1204, %v1206
        %v1210 = vperm.slane %v1173, 0
        %v1212 = vadd.f32 %v1208, %v1210
        %v1213 = vpack.c.bf16 %v1212, %v1212
        %v1214 = vld [vmem:[%s10] sm:$0xf]
        %v1215 = vld [vmem:[%s10 + $0x4] sm:$0xf]
        %v1216 = vld [vmem:[%s10 + $0x8] sm:$0xf]
        %v1217 = vld [vmem:[%s10 + $0xc] sm:$0xf]
        %v1218 = vld [vmem:[%s10 + $0x10] sm:$0xf]
        %v1219 = vld [vmem:[%s10 + $0x14] sm:$0xf]
        %v1220 = vld [vmem:[%s10 + $0x18] sm:$0xf]
        %v1221 = vld [vmem:[%s10 + $0x1c] sm:$0xf]
        %v1222 = vld [vmem:[%s11] sm:$0x1]
        %v1224 = vperm.slane %v1222, 0
        %v1234 = vunpack.c.l.b16 %v1214
        %v1235 = vunpack.c.l.b16 %v1215
        %v1236 = vunpack.c.l.b16 %v1216
        %v1237 = vunpack.c.l.b16 %v1217
        %v1238 = vunpack.c.l.b16 %v1218
        %v1239 = vunpack.c.l.b16 %v1219
        %v1240 = vunpack.c.l.b16 %v1220
        %v1241 = vunpack.c.l.b16 %v1221
        %v1242 = vpack.c.b16 %v1235, %v1234
        %v1243 = vpack.c.b16 %v1237, %v1236
        %v1244 = vpack.c.b16 %v1239, %v1238
        %v1245 = vpack.c.b16 %v1241, %v1240
        %v1247 = vsel %vm790, %v1213, 0
        %v1250 = vsel %vm790, %v1242, 0
        %v1253 = vsel %vm790, %v1243, 0
        %v1256 = vsel %vm790, %v1244, 0
        %v1259 = vsel %vm790, %v1245, 0
        %1261 = vmatpush.bf16.xpose.msra.mxu0 0
        %1262 = vmatpush.bf16.xpose.msra.mxu0 0
        %1263 = vmatpush.bf16.xpose.msra.mxu0 0
        %1264 = vmatpush.bf16.xpose.msra.mxu0 0
        %1265 = vmatpush.bf16.xpose.msra.mxu0 %v1259
        %1266 = vmatpush.bf16.xpose.msra.mxu0 %v1256
        %1267 = vmatpush.bf16.xpose.msra.mxu0 %v1253
        %1268 = vmatpush.bf16.xpose.msra.mxu0 %v1250
        %1269 = vmatmul.bf16.gmra.mxu0 %v1247
        %v1270 = vpop.f32.mrf.mxu0
        %v1271 = vadd.f32 %v1224, %v1270
        %v1272 = vpop.f32.mrf.mxu0
        %1273 = vdwg.mxu0
        %v1274 = vmax.f32 %v1271, 0.0
        %v1275 = vpack.c.bf16 %v1274, %v1274
        %v1276 = vld [vmem:[#allocation10] sm:$0xf]
        %v1277 = vld [vmem:[#allocation10 + $0x4] sm:$0xf]
        %v1278 = vld [vmem:[#allocation10 + $0x8] sm:$0xf]
        %v1279 = vld [vmem:[#allocation10 + $0xc] sm:$0xf]
        %v1280 = vld [vmem:[%s13] sm:$0x1]
        %v1282 = vperm.slane %v1280, 0
        %v1288 = vunpack.c.l.b16 %v1276
        %v1289 = vunpack.c.l.b16 %v1277
        %v1290 = vunpack.c.l.b16 %v1278
        %v1291 = vunpack.c.l.b16 %v1279
        %v1292 = vpack.c.b16 %v1289, %v1288
        %v1293 = vpack.c.b16 %v1291, %v1290
        %vm1294 = vcmask 523264
        %v1296 = vsel %vm1294, %v1275, 0
        %v1299 = vsel %vm1294, %v1292, 0
        %v1302 = vsel %vm1294, %v1293, 0
        %1304 = vmatpush.bf16.xpose.msra.mxu0 0
        %1305 = vmatpush.bf16.xpose.msra.mxu0 0
        %1306 = vmatpush.bf16.xpose.msra.mxu0 0
        %1307 = vmatpush.bf16.xpose.msra.mxu0 0
        %1308 = vmatpush.bf16.xpose.msra.mxu0 0
        %1309 = vmatpush.bf16.xpose.msra.mxu0 0
        %1310 = vmatpush.bf16.xpose.msra.mxu0 %v1302
        %1311 = vmatpush.bf16.xpose.msra.mxu0 %v1299
        %1312 = vmatmul.bf16.gmra.mxu0 %v1296
        %v1313 = vpop.f32.mrf.mxu0
        %v1314 = vadd.f32 %v1282, %v1313
        %v1315 = vpop.f32.mrf.mxu0
        %1316 = vdwg.mxu0
        %v1317 = vadd.f32 %v1212, %v1314
        %v1318 = vld [vmem:[%s16] sm:$0x1]
        %v1319 = vld [vmem:[%s17] sm:$0x1]
        %v1320 = vsel %vm790, %v1317, 0.0
        %1321 = vadd.xlane.f32.xlu0 %v1320
        %v1322 = vpop.xlane.xlu0 %1321
        %v1323 = vmul.f32 %v1322, %v1183
        %v1324 = vmul.f32 %v1317, %v1317
        %v1325 = vsel %vm790, %v1324, 0.0
        %1326 = vadd.xlane.f32.xlu0 %v1325
        %v1327 = vpop.xlane.xlu0 %1326
        %v1328 = vmul.f32 %v1327, %v1183
        %v1329 = vsub.f32 %v1317, %v1323
        %v1330 = vmul.f32 %v1323, %v1323
        %v1331 = vsub.f32 %v1328, %v1330
        %v1332 = vadd.f32 %v1331, 1e-05
        %v1333 = vrsqrt.pop %v1332
        %v1334 = vmul.f32 %v1333, %v1332
        %v1335 = vmul.f32 %v1334, %v1333
        %v1336 = vmul.f32 0.5, %v1335
        %v1337 = vsub.f32 1.5, %v1336
        %v1338 = vmul.f32 %v1333, %v1337
        %vm1339 = vweird.f32 %v1332
        %vm1340 = vweird.f32 %v1333
        %vm1341 = vmor %vm1339, %vm1340
        %v1342 = vsel %vm1341, %v1333, %v1338
        %v1343 = vmul.f32 %v1329, %v1342
        %v1345 = vperm.slane %v1318, 0
        %v1347 = vmul.f32 %v1343, %v1345
        %v1349 = vperm.slane %v1319, 0
        %v1351 = vadd.f32 %v1347, %v1349
        %1352 = vst.msk [vmem:[%s668] sm:$0xff] %vm790, %v1351
        %s1353 = sand.u32 %s447, 1
        %s1354 = scalar_lea.sflag [#allocation6], %s1353
        %s1355 = sand.u32 %s447, 1
        %s1356 = smul.addr %s1355, 8
        %s1357 = scalar_lea.vmem [#allocation12], %s1356
        // Predicated region
        $region113: #{tpu_custom_call.1} parent=91 // pred_check
          %p1358 = pneg %p457
        $region114: #{tpu_custom_call.1} parent=91 // pred_check_branch
          %1360 = sbr.rel (%p1358) target = $region116
        $region115: #{tpu_custom_call.1} parent=91 // pred_region
          %1362 = vsyncadd %s1354, 0
          %s1363 = sadd.s32 %s40, %s39
          %s1364 = smul.addr %s1363, 8
          %s1365 = scalar_lea.hbm %s18, %s1364
          %s1367 = sshll.u32 %s1357, 4
          %s1368 = int_to_ptr.vmem [resolvable:$true] %s1367
          %s1369 = sshll.u32 %s1365, 4
          %s1370 = int_to_ptr.hbm [resolvable:$true] %s1369
          %1372 = dma.vmem_to_hbm [thread:$0]  %s1368, 128, %s1370, %s1354
        $region116: #{tpu_custom_call.1} parent=91 // pred_fallthru
          _
      $region92: #{tpu_custom_call.1} parent=5 // pred_fallthru
        _
      %p1373 = scmp.le.s32.totalorder 2, %s30
      // Predicated region
      $region117: #{tpu_custom_call.1} parent=5 // pred_check
        %p1374 = pneg %p1373
      $region118: #{tpu_custom_call.1} parent=5 // pred_check_branch
        %1376 = sbr.rel (%p1374) target = $region120
      $region119: #{tpu_custom_call.1} parent=5 // pred_region
        %s1377 = ssub.s32 %s30, 2
        // Predicated region
        $region121: #{tpu_custom_call.1} parent=119 // pred_check
          %p1378 = pneg %p463
        $region122: #{tpu_custom_call.1} parent=119 // pred_check_branch
          %1380 = sbr.rel (%p1378) target = $region124
        $region123: #{tpu_custom_call.1} parent=119 // pred_region
          %s1381 = sand.u32 %s448, 1
          %s1382 = scalar_lea.sflag [#allocation6], %s1381
          %s1383 = sand.u32 %s448, 1
          %s1384 = smul.addr %s1383, 8
          %s1385 = scalar_lea.vmem [#allocation12], %s1384
          %1387 = dma.done %s1382, 128
        $region124: #{tpu_custom_call.1} parent=119 // pred_fallthru
          _
      $region120: #{tpu_custom_call.1} parent=5 // pred_fallthru
        _
    $region6: #{tpu_custom_call.1} parent=1 // loop_footer
      %s34 = sadd.s32 1, %s30
    $region7: #{tpu_custom_call.1} parent=1 // loop_footer_branch
      %29 = sbr.rel target = $region3
    $region8: #{tpu_custom_call.1} parent=1 // loop_exit
      _
    %1388 = vsyncpa [#allocation5], 1
    %s1389 = scalar_lea.sflag [#allocation5], 1
    %1390 = vsyncpa %s1389, 1
    %1391 = vsyncpa [#allocation8], 1
    %1392 = vsyncpa [#allocation11], 1
    %1393 = vsyncpa [#allocation6], 1
    %s1394 = scalar_lea.sflag [#allocation6], 1
    %1395 = vsyncpa %s1394, 1

</llo_original>
